<compile_context>
chip_gen: v5e
topology: v5e:2x2
jax: 0.10.0
libtpu: 0.0.40
codegen_flags: <defaults>
</compile_context>

<pallas_src>
import functools

import jax
import jax.numpy as jnp
from jax.experimental import pallas as pl
from jax.experimental.pallas import tpu as pltpu


def _round_up(x, m):
    return ((x + m - 1) // m) * m


def _num_tensorcores():
    """Heuristic TensorCores per device (perf-only knob; correctness-safe)."""
    try:
        kind = jax.devices()[0].device_kind.lower()
    except Exception:
        return 1
    return 2 if any(t in kind for t in ("v7", "7x", "v4", "v5p")) else 1


def _make_basic_block_kernel(B, Cin, K, Wp, Q_pad):
    """Kernel over a block of B images: fused conv via per-tap MXU accumulation."""

    def kernel(x_ref, w_ref, b_ref, o_ref):
        # x_ref: (B, Cin, Lp_pad)   zero-padded images, flat padded spatial on lanes
        # w_ref: (K*K, Cout2, Cin)  fused (conv2 @ conv1) weight, one tile per tap
        # b_ref: (Cout2, 1)         fused bias  (W2 @ b1 + b2)
        # o_ref: (B, Cout2, Q_pad)  fused conv output on the flat padded grid
        bias = b_ref[...]
        for b in range(B):
            acc = None
            for ky in range(K):
                for kx in range(K):
                    t = ky * K + kx
                    off = ky * Wp + kx                    # static lane shift of this tap
                    x_t = x_ref[b, :, off:off + Q_pad]    # (Cin, Q_pad)
                    p = jnp.dot(w_ref[t], x_t,
                                preferred_element_type=jnp.float32)
                    acc = p if acc is None else acc + p
            o_ref[b] = (acc + bias).astype(o_ref.dtype)

    return kernel


def prepare_basic_block_params(w1, b1, w2, b2, *, group_size):
    """Fold conv1 (grouped KxK) and conv2 (1x1) into one dense conv.

    Run once per parameter update (outside the forward hot path).
    Returns:
      w_taps : (K*K, Cout2, Cin)  tap-major fused weight
      b_fused: (Cout2, 1)         W2 @ b1 + b2
    Exact fusion: this BasicBlock has no nonlinearity/norm between the convs.
    """
    Cout, Cin_g, K, _ = w1.shape
    G = group_size
    Cin = Cin_g * G
    Cout_g = Cout // G
    Cout2 = w2.shape[0]

    # Grouped weight -> block-diagonal dense (Cout, Cin, K, K).
    w1_full = jnp.zeros((Cout, Cin, K, K), w1.dtype)
    for g in range(G):
        w1_full = w1_full.at[g * Cout_g:(g + 1) * Cout_g,
                             g * Cin_g:(g + 1) * Cin_g].set(
            w1[g * Cout_g:(g + 1) * Cout_g])

    w2m = w2.reshape(Cout2, Cout)
    w_fused = jnp.einsum("om,mckl->ockl", w2m, w1_full)        # (Cout2, Cin, K, K)
    w_taps = jnp.transpose(w_fused, (2, 3, 0, 1)).reshape(K * K, Cout2, Cin)
    b_fused = (w2m @ b1 + b2).reshape(Cout2, 1)
    return w_taps, b_fused


def basic_block_forward(x_nchw, w_taps, b_fused, *, kernel_size, stride=1):
    """Pallas implementation of BasicBlock.forward (stride=1)."""
    # TODO(synk): stride>1 path not implemented (module default is stride=1).
    assert stride == 1
    N, Cin, H, W = x_nchw.shape
    K = kernel_size
    P = K // 2
    KK, Cout2, Cin_w = w_taps.shape
    assert KK == K * K and Cin_w == Cin

    Hp, Wp = H + 2 * P, W + 2 * P
    max_off = (K - 1) * Wp + (K - 1)
    # Lane-dense output: columns padded to a multiple of 128 that also covers
    # H*Wp, so reconstruction below is reshape + slice only.
    Q_pad = _round_up(max((H - 1) * Wp + W, H * Wp), 128)
    Lp_pad = _round_up(Q_pad + max_off, 128)

    # Pad spatially with zeros, stay NCHW, flatten padded spatial onto lanes,
    # zero-extend the flat axis to Lp_pad so every tap window is in-bounds.
    x_pad = jnp.pad(x_nchw, ((0, 0), (0, 0), (P, P), (P, P)))
    x_flat = x_pad.reshape(N, Cin, Hp * Wp)
    x_flat = jnp.pad(x_flat, ((0, 0), (0, 0), (0, Lp_pad - Hp * Wp)))

    # One grid step per TensorCore: single step on 1-TC chips (v5e/v6e),
    # 2-way batch split on 2-TC chips (v7x / megacore).
    num_tc = _num_tensorcores()
    n_steps = num_tc if (num_tc > 1 and N % num_tc == 0) else 1
    B = N // n_steps

    kernel = _make_basic_block_kernel(B, Cin, K, Wp, Q_pad)

    out_flat = pl.pallas_call(
        kernel,
        out_shape=jax.ShapeDtypeStruct((N, Cout2, Q_pad), x_nchw.dtype),
        grid_spec=pltpu.PrefetchScalarGridSpec(
            num_scalar_prefetch=0,
            grid=(n_steps,),
            in_specs=[
                pl.BlockSpec((B, Cin, Lp_pad), lambda n: (n, 0, 0)),
                pl.BlockSpec((K * K, Cout2, Cin), lambda n: (0, 0, 0)),
                pl.BlockSpec((Cout2, 1), lambda n: (0, 0)),
            ],
            out_specs=pl.BlockSpec((B, Cout2, Q_pad), lambda n: (n, 0, 0)),
        ),
        compiler_params=pltpu.CompilerParams(
            dimension_semantics=("parallel",)),
    )(x_flat, w_taps, b_fused)

    # Column q = h*Wp + w of the flat output is pixel (h, w); columns with
    # w >= W (and q >= H*Wp) are window spill and are dropped here.
    out = out_flat[:, :, :H * Wp].reshape(N, Cout2, H, Wp)[:, :, :, :W]
    return out  # NCHW


def _reference(x_nchw, w1, b1, w2, b2, *, group_size, kernel_size, stride=1):
    """Pure-JAX reference matching torch Conv2d semantics."""
    P = kernel_size // 2
    dn = ("NCHW", "OIHW", "NCHW")
    y = jax.lax.conv_general_dilated(
        x_nchw, w1, window_strides=(stride, stride),
        padding=[(P, P), (P, P)], dimension_numbers=dn,
        feature_group_count=group_size)
    y = y + b1[None, :, None, None]
    y = jax.lax.conv_general_dilated(
        y, w2, window_strides=(stride, stride),
        padding=[(0, 0), (0, 0)], dimension_numbers=dn)
    y = y + b2[None, :, None, None]
    return y


if __name__ == "__main__":
    # Module hyperparameters (forward: grouped KxK conv -> 1x1 conv).
    N, Cin, H, W = 2, 8, 16, 16
    Cout = 16
    group_size = 2
    kernel_size = 3
    stride = 1

    key = jax.random.PRNGKey(0)
    kx, kw1, kb1, kw2, kb2 = jax.random.split(key, 5)

    x = jax.random.normal(kx, (N, Cin, H, W), jnp.float32)
    # Deterministic synthetic parameters (shapes per nn.Conv2d in __init__).
    w1 = 0.1 * jax.random.normal(
        kw1, (Cout, Cin // group_size, kernel_size, kernel_size), jnp.float32)
    b1 = 0.1 * jax.random.normal(kb1, (Cout,), jnp.float32)
    w2 = 0.1 * jax.random.normal(kw2, (Cout, Cout, 1, 1), jnp.float32)
    b2 = 0.1 * jax.random.normal(kb2, (Cout,), jnp.float32)

    # Weight prep hoisted out of the forward path (once per parameter update).
    w_taps, b_fused = prepare_basic_block_params(w1, b1, w2, b2,
                                                 group_size=group_size)
    w_taps = jax.block_until_ready(w_taps)

    fwd = jax.jit(functools.partial(basic_block_forward,
                                    kernel_size=kernel_size, stride=stride))
    out = fwd(x, w_taps, b_fused)
    out = jax.block_until_ready(out)

    ref = _reference(x, w1, b1, w2, b2, group_size=group_size,
                     kernel_size=kernel_size, stride=stride)
    assert out.shape == ref.shape == (N, Cout, H, W)
    assert jnp.allclose(out, ref, atol=1e-4, rtol=1e-4), \
        float(jnp.max(jnp.abs(out - ref)))

    print("KERNEL_OK")
</pallas_src>

<mosaic_0001>
module attributes {stable_mosaic.version = 11 : i64} {
  func.func @kernel(%arg0: i32, %arg1: memref<2x8x512xf32, #tpu.memory_space<vmem>>, %arg2: memref<9x16x8xf32, #tpu.memory_space<vmem>>, %arg3: memref<16x1xf32, #tpu.memory_space<vmem>>, %arg4: memref<2x16x384xf32, #tpu.memory_space<vmem>>) attributes {dimension_semantics = [#tpu.dimension_semantics<parallel>], iteration_bounds = array<i64: 1>, scalar_prefetch = 0 : i64, scratch_operands = 0 : i64, tpu.core_type = #tpu.core_type<tc>, window_params = [{transform_indices = @transform_0, window_bounds = array<i64: 2, 8, 512>}, {pipeline_mode = #tpu.pipeline_mode<synchronous>, transform_indices = @transform_1, window_bounds = array<i64: 9, 16, 8>}, {pipeline_mode = #tpu.pipeline_mode<synchronous>, transform_indices = @transform_2, window_bounds = array<i64: 16, 1>}, {transform_indices = @transform_3, window_bounds = array<i64: 2, 16, 384>}]} {
    %c0 = arith.constant 0 : index
    %c0_0 = arith.constant 0 : index
    %0 = vector.load %arg3[%c0, %c0_0] : memref<16x1xf32, #tpu.memory_space<vmem>>, vector<16x1xf32>
    %c0_1 = arith.constant 0 : index
    %c0_2 = arith.constant 0 : index
    %c0_3 = arith.constant 0 : index
    %1 = vector.load %arg1[%c0_1, %c0_2, %c0_3] : memref<2x8x512xf32, #tpu.memory_space<vmem>>, vector<1x8x384xf32>
    %2 = vector.shape_cast %1 : vector<1x8x384xf32> to vector<8x384xf32>
    %c0_4 = arith.constant 0 : index
    %c0_5 = arith.constant 0 : index
    %c0_6 = arith.constant 0 : index
    %3 = vector.load %arg2[%c0_4, %c0_5, %c0_6] : memref<9x16x8xf32, #tpu.memory_space<vmem>>, vector<1x16x8xf32>
    %4 = vector.shape_cast %3 : vector<1x16x8xf32> to vector<16x8xf32>
    %cst = arith.constant dense<0.000000e+00> : vector<16x384xf32>
    %5 = tpu.matmul %4, %2, %cst {dimension_numbers = #tpu.dot_dimension_numbers<[1], [0], [0], [1], [0, 0, 1, 1], [], []>} : vector<16x8xf32>, vector<8x384xf32>, vector<16x384xf32> -> vector<16x384xf32>
    %c0_7 = arith.constant 0 : index
    %c0_8 = arith.constant 0 : index
    %c1 = arith.constant 1 : index
    %6 = vector.load %arg1[%c0_7, %c0_8, %c1] : memref<2x8x512xf32, #tpu.memory_space<vmem>>, vector<1x8x384xf32>
    %7 = vector.shape_cast %6 : vector<1x8x384xf32> to vector<8x384xf32>
    %c1_9 = arith.constant 1 : index
    %c0_10 = arith.constant 0 : index
    %c0_11 = arith.constant 0 : index
    %8 = vector.load %arg2[%c1_9, %c0_10, %c0_11] : memref<9x16x8xf32, #tpu.memory_space<vmem>>, vector<1x16x8xf32>
    %9 = vector.shape_cast %8 : vector<1x16x8xf32> to vector<16x8xf32>
    %cst_12 = arith.constant dense<0.000000e+00> : vector<16x384xf32>
    %10 = tpu.matmul %9, %7, %cst_12 {dimension_numbers = #tpu.dot_dimension_numbers<[1], [0], [0], [1], [0, 0, 1, 1], [], []>} : vector<16x8xf32>, vector<8x384xf32>, vector<16x384xf32> -> vector<16x384xf32>
    %11 = arith.addf %5, %10 : vector<16x384xf32>
    %c0_13 = arith.constant 0 : index
    %c0_14 = arith.constant 0 : index
    %c2 = arith.constant 2 : index
    %12 = vector.load %arg1[%c0_13, %c0_14, %c2] : memref<2x8x512xf32, #tpu.memory_space<vmem>>, vector<1x8x384xf32>
    %13 = vector.shape_cast %12 : vector<1x8x384xf32> to vector<8x384xf32>
    %c2_15 = arith.constant 2 : index
    %c0_16 = arith.constant 0 : index
    %c0_17 = arith.constant 0 : index
    %14 = vector.load %arg2[%c2_15, %c0_16, %c0_17] : memref<9x16x8xf32, #tpu.memory_space<vmem>>, vector<1x16x8xf32>
    %15 = vector.shape_cast %14 : vector<1x16x8xf32> to vector<16x8xf32>
    %cst_18 = arith.constant dense<0.000000e+00> : vector<16x384xf32>
    %16 = tpu.matmul %15, %13, %cst_18 {dimension_numbers = #tpu.dot_dimension_numbers<[1], [0], [0], [1], [0, 0, 1, 1], [], []>} : vector<16x8xf32>, vector<8x384xf32>, vector<16x384xf32> -> vector<16x384xf32>
    %17 = arith.addf %11, %16 : vector<16x384xf32>
    %c0_19 = arith.constant 0 : index
    %c0_20 = arith.constant 0 : index
    %c18 = arith.constant 18 : index
    %18 = vector.load %arg1[%c0_19, %c0_20, %c18] : memref<2x8x512xf32, #tpu.memory_space<vmem>>, vector<1x8x384xf32>
    %19 = vector.shape_cast %18 : vector<1x8x384xf32> to vector<8x384xf32>
    %c3 = arith.constant 3 : index
    %c0_21 = arith.constant 0 : index
    %c0_22 = arith.constant 0 : index
    %20 = vector.load %arg2[%c3, %c0_21, %c0_22] : memref<9x16x8xf32, #tpu.memory_space<vmem>>, vector<1x16x8xf32>
    %21 = vector.shape_cast %20 : vector<1x16x8xf32> to vector<16x8xf32>
    %cst_23 = arith.constant dense<0.000000e+00> : vector<16x384xf32>
    %22 = tpu.matmul %21, %19, %cst_23 {dimension_numbers = #tpu.dot_dimension_numbers<[1], [0], [0], [1], [0, 0, 1, 1], [], []>} : vector<16x8xf32>, vector<8x384xf32>, vector<16x384xf32> -> vector<16x384xf32>
    %23 = arith.addf %17, %22 : vector<16x384xf32>
    %c0_24 = arith.constant 0 : index
    %c0_25 = arith.constant 0 : index
    %c19 = arith.constant 19 : index
    %24 = vector.load %arg1[%c0_24, %c0_25, %c19] : memref<2x8x512xf32, #tpu.memory_space<vmem>>, vector<1x8x384xf32>
    %25 = vector.shape_cast %24 : vector<1x8x384xf32> to vector<8x384xf32>
    %c4 = arith.constant 4 : index
    %c0_26 = arith.constant 0 : index
    %c0_27 = arith.constant 0 : index
    %26 = vector.load %arg2[%c4, %c0_26, %c0_27] : memref<9x16x8xf32, #tpu.memory_space<vmem>>, vector<1x16x8xf32>
    %27 = vector.shape_cast %26 : vector<1x16x8xf32> to vector<16x8xf32>
    %cst_28 = arith.constant dense<0.000000e+00> : vector<16x384xf32>
    %28 = tpu.matmul %27, %25, %cst_28 {dimension_numbers = #tpu.dot_dimension_numbers<[1], [0], [0], [1], [0, 0, 1, 1], [], []>} : vector<16x8xf32>, vector<8x384xf32>, vector<16x384xf32> -> vector<16x384xf32>
    %29 = arith.addf %23, %28 : vector<16x384xf32>
    %c0_29 = arith.constant 0 : index
    %c0_30 = arith.constant 0 : index
    %c20 = arith.constant 20 : index
    %30 = vector.load %arg1[%c0_29, %c0_30, %c20] : memref<2x8x512xf32, #tpu.memory_space<vmem>>, vector<1x8x384xf32>
    %31 = vector.shape_cast %30 : vector<1x8x384xf32> to vector<8x384xf32>
    %c5 = arith.constant 5 : index
    %c0_31 = arith.constant 0 : index
    %c0_32 = arith.constant 0 : index
    %32 = vector.load %arg2[%c5, %c0_31, %c0_32] : memref<9x16x8xf32, #tpu.memory_space<vmem>>, vector<1x16x8xf32>
    %33 = vector.shape_cast %32 : vector<1x16x8xf32> to vector<16x8xf32>
    %cst_33 = arith.constant dense<0.000000e+00> : vector<16x384xf32>
    %34 = tpu.matmul %33, %31, %cst_33 {dimension_numbers = #tpu.dot_dimension_numbers<[1], [0], [0], [1], [0, 0, 1, 1], [], []>} : vector<16x8xf32>, vector<8x384xf32>, vector<16x384xf32> -> vector<16x384xf32>
    %35 = arith.addf %29, %34 : vector<16x384xf32>
    %c0_34 = arith.constant 0 : index
    %c0_35 = arith.constant 0 : index
    %c36 = arith.constant 36 : index
    %36 = vector.load %arg1[%c0_34, %c0_35, %c36] : memref<2x8x512xf32, #tpu.memory_space<vmem>>, vector<1x8x384xf32>
    %37 = vector.shape_cast %36 : vector<1x8x384xf32> to vector<8x384xf32>
    %c6 = arith.constant 6 : index
    %c0_36 = arith.constant 0 : index
    %c0_37 = arith.constant 0 : index
    %38 = vector.load %arg2[%c6, %c0_36, %c0_37] : memref<9x16x8xf32, #tpu.memory_space<vmem>>, vector<1x16x8xf32>
    %39 = vector.shape_cast %38 : vector<1x16x8xf32> to vector<16x8xf32>
    %cst_38 = arith.constant dense<0.000000e+00> : vector<16x384xf32>
    %40 = tpu.matmul %39, %37, %cst_38 {dimension_numbers = #tpu.dot_dimension_numbers<[1], [0], [0], [1], [0, 0, 1, 1], [], []>} : vector<16x8xf32>, vector<8x384xf32>, vector<16x384xf32> -> vector<16x384xf32>
    %41 = arith.addf %35, %40 : vector<16x384xf32>
    %c0_39 = arith.constant 0 : index
    %c0_40 = arith.constant 0 : index
    %c37 = arith.constant 37 : index
    %42 = vector.load %arg1[%c0_39, %c0_40, %c37] : memref<2x8x512xf32, #tpu.memory_space<vmem>>, vector<1x8x384xf32>
    %43 = vector.shape_cast %42 : vector<1x8x384xf32> to vector<8x384xf32>
    %c7 = arith.constant 7 : index
    %c0_41 = arith.constant 0 : index
    %c0_42 = arith.constant 0 : index
    %44 = vector.load %arg2[%c7, %c0_41, %c0_42] : memref<9x16x8xf32, #tpu.memory_space<vmem>>, vector<1x16x8xf32>
    %45 = vector.shape_cast %44 : vector<1x16x8xf32> to vector<16x8xf32>
    %cst_43 = arith.constant dense<0.000000e+00> : vector<16x384xf32>
    %46 = tpu.matmul %45, %43, %cst_43 {dimension_numbers = #tpu.dot_dimension_numbers<[1], [0], [0], [1], [0, 0, 1, 1], [], []>} : vector<16x8xf32>, vector<8x384xf32>, vector<16x384xf32> -> vector<16x384xf32>
    %47 = arith.addf %41, %46 : vector<16x384xf32>
    %c0_44 = arith.constant 0 : index
    %c0_45 = arith.constant 0 : index
    %c38 = arith.constant 38 : index
    %48 = vector.load %arg1[%c0_44, %c0_45, %c38] : memref<2x8x512xf32, #tpu.memory_space<vmem>>, vector<1x8x384xf32>
    %49 = vector.shape_cast %48 : vector<1x8x384xf32> to vector<8x384xf32>
    %c8 = arith.constant 8 : index
    %c0_46 = arith.constant 0 : index
    %c0_47 = arith.constant 0 : index
    %50 = vector.load %arg2[%c8, %c0_46, %c0_47] : memref<9x16x8xf32, #tpu.memory_space<vmem>>, vector<1x16x8xf32>
    %51 = vector.shape_cast %50 : vector<1x16x8xf32> to vector<16x8xf32>
    %cst_48 = arith.constant dense<0.000000e+00> : vector<16x384xf32>
    %52 = tpu.matmul %51, %49, %cst_48 {dimension_numbers = #tpu.dot_dimension_numbers<[1], [0], [0], [1], [0, 0, 1, 1], [], []>} : vector<16x8xf32>, vector<8x384xf32>, vector<16x384xf32> -> vector<16x384xf32>
    %53 = arith.addf %47, %52 : vector<16x384xf32>
    %54 = vector.broadcast %0 : vector<16x1xf32> to vector<16x384xf32>
    %55 = arith.addf %53, %54 : vector<16x384xf32>
    %c0_49 = arith.constant 0 : index
    %c0_50 = arith.constant 0 : index
    %c0_51 = arith.constant 0 : index
    %56 = vector.load %arg4[%c0_49, %c0_50, %c0_51] : memref<2x16x384xf32, #tpu.memory_space<vmem>>, vector<1x16x384xf32>
    %57 = vector.shape_cast %56 : vector<1x16x384xf32> to vector<16x384xf32>
    %58 = vector.shape_cast %55 : vector<16x384xf32> to vector<1x16x384xf32>
    tpu.vector_store %arg4[%c0_49, %c0_50, %c0_51], %58 {strides = array<i32>} : memref<2x16x384xf32, #tpu.memory_space<vmem>>, vector<1x16x384xf32>,
    %c1_52 = arith.constant 1 : index
    %c0_53 = arith.constant 0 : index
    %c0_54 = arith.constant 0 : index
    %59 = vector.load %arg1[%c1_52, %c0_53, %c0_54] : memref<2x8x512xf32, #tpu.memory_space<vmem>>, vector<1x8x384xf32>
    %60 = vector.shape_cast %59 : vector<1x8x384xf32> to vector<8x384xf32>
    %c0_55 = arith.constant 0 : index
    %c0_56 = arith.constant 0 : index
    %c0_57 = arith.constant 0 : index
    %61 = vector.load %arg2[%c0_55, %c0_56, %c0_57] : memref<9x16x8xf32, #tpu.memory_space<vmem>>, vector<1x16x8xf32>
    %62 = vector.shape_cast %61 : vector<1x16x8xf32> to vector<16x8xf32>
    %cst_58 = arith.constant dense<0.000000e+00> : vector<16x384xf32>
    %63 = tpu.matmul %62, %60, %cst_58 {dimension_numbers = #tpu.dot_dimension_numbers<[1], [0], [0], [1], [0, 0, 1, 1], [], []>} : vector<16x8xf32>, vector<8x384xf32>, vector<16x384xf32> -> vector<16x384xf32>
    %c1_59 = arith.constant 1 : index
    %c0_60 = arith.constant 0 : index
    %c1_61 = arith.constant 1 : index
    %64 = vector.load %arg1[%c1_59, %c0_60, %c1_61] : memref<2x8x512xf32, #tpu.memory_space<vmem>>, vector<1x8x384xf32>
    %65 = vector.shape_cast %64 : vector<1x8x384xf32> to vector<8x384xf32>
    %c1_62 = arith.constant 1 : index
    %c0_63 = arith.constant 0 : index
    %c0_64 = arith.constant 0 : index
    %66 = vector.load %arg2[%c1_62, %c0_63, %c0_64] : memref<9x16x8xf32, #tpu.memory_space<vmem>>, vector<1x16x8xf32>
    %67 = vector.shape_cast %66 : vector<1x16x8xf32> to vector<16x8xf32>
    %cst_65 = arith.constant dense<0.000000e+00> : vector<16x384xf32>
    %68 = tpu.matmul %67, %65, %cst_65 {dimension_numbers = #tpu.dot_dimension_numbers<[1], [0], [0], [1], [0, 0, 1, 1], [], []>} : vector<16x8xf32>, vector<8x384xf32>, vector<16x384xf32> -> vector<16x384xf32>
    %69 = arith.addf %63, %68 : vector<16x384xf32>
    %c1_66 = arith.constant 1 : index
    %c0_67 = arith.constant 0 : index
    %c2_68 = arith.constant 2 : index
    %70 = vector.load %arg1[%c1_66, %c0_67, %c2_68] : memref<2x8x512xf32, #tpu.memory_space<vmem>>, vector<1x8x384xf32>
    %71 = vector.shape_cast %70 : vector<1x8x384xf32> to vector<8x384xf32>
    %c2_69 = arith.constant 2 : index
    %c0_70 = arith.constant 0 : index
    %c0_71 = arith.constant 0 : index
    %72 = vector.load %arg2[%c2_69, %c0_70, %c0_71] : memref<9x16x8xf32, #tpu.memory_space<vmem>>, vector<1x16x8xf32>
    %73 = vector.shape_cast %72 : vector<1x16x8xf32> to vector<16x8xf32>
    %cst_72 = arith.constant dense<0.000000e+00> : vector<16x384xf32>
    %74 = tpu.matmul %73, %71, %cst_72 {dimension_numbers = #tpu.dot_dimension_numbers<[1], [0], [0], [1], [0, 0, 1, 1], [], []>} : vector<16x8xf32>, vector<8x384xf32>, vector<16x384xf32> -> vector<16x384xf32>
    %75 = arith.addf %69, %74 : vector<16x384xf32>
    %c1_73 = arith.constant 1 : index
    %c0_74 = arith.constant 0 : index
    %c18_75 = arith.constant 18 : index
    %76 = vector.load %arg1[%c1_73, %c0_74, %c18_75] : memref<2x8x512xf32, #tpu.memory_space<vmem>>, vector<1x8x384xf32>
    %77 = vector.shape_cast %76 : vector<1x8x384xf32> to vector<8x384xf32>
    %c3_76 = arith.constant 3 : index
    %c0_77 = arith.constant 0 : index
    %c0_78 = arith.constant 0 : index
    %78 = vector.load %arg2[%c3_76, %c0_77, %c0_78] : memref<9x16x8xf32, #tpu.memory_space<vmem>>, vector<1x16x8xf32>
    %79 = vector.shape_cast %78 : vector<1x16x8xf32> to vector<16x8xf32>
    %cst_79 = arith.constant dense<0.000000e+00> : vector<16x384xf32>
    %80 = tpu.matmul %79, %77, %cst_79 {dimension_numbers = #tpu.dot_dimension_numbers<[1], [0], [0], [1], [0, 0, 1, 1], [], []>} : vector<16x8xf32>, vector<8x384xf32>, vector<16x384xf32> -> vector<16x384xf32>
    %81 = arith.addf %75, %80 : vector<16x384xf32>
    %c1_80 = arith.constant 1 : index
    %c0_81 = arith.constant 0 : index
    %c19_82 = arith.constant 19 : index
    %82 = vector.load %arg1[%c1_80, %c0_81, %c19_82] : memref<2x8x512xf32, #tpu.memory_space<vmem>>, vector<1x8x384xf32>
    %83 = vector.shape_cast %82 : vector<1x8x384xf32> to vector<8x384xf32>
    %c4_83 = arith.constant 4 : index
    %c0_84 = arith.constant 0 : index
    %c0_85 = arith.constant 0 : index
    %84 = vector.load %arg2[%c4_83, %c0_84, %c0_85] : memref<9x16x8xf32, #tpu.memory_space<vmem>>, vector<1x16x8xf32>
    %85 = vector.shape_cast %84 : vector<1x16x8xf32> to vector<16x8xf32>
    %cst_86 = arith.constant dense<0.000000e+00> : vector<16x384xf32>
    %86 = tpu.matmul %85, %83, %cst_86 {dimension_numbers = #tpu.dot_dimension_numbers<[1], [0], [0], [1], [0, 0, 1, 1], [], []>} : vector<16x8xf32>, vector<8x384xf32>, vector<16x384xf32> -> vector<16x384xf32>
    %87 = arith.addf %81, %86 : vector<16x384xf32>
    %c1_87 = arith.constant 1 : index
    %c0_88 = arith.constant 0 : index
    %c20_89 = arith.constant 20 : index
    %88 = vector.load %arg1[%c1_87, %c0_88, %c20_89] : memref<2x8x512xf32, #tpu.memory_space<vmem>>, vector<1x8x384xf32>
    %89 = vector.shape_cast %88 : vector<1x8x384xf32> to vector<8x384xf32>
    %c5_90 = arith.constant 5 : index
    %c0_91 = arith.constant 0 : index
    %c0_92 = arith.constant 0 : index
    %90 = vector.load %arg2[%c5_90, %c0_91, %c0_92] : memref<9x16x8xf32, #tpu.memory_space<vmem>>, vector<1x16x8xf32>
    %91 = vector.shape_cast %90 : vector<1x16x8xf32> to vector<16x8xf32>
    %cst_93 = arith.constant dense<0.000000e+00> : vector<16x384xf32>
    %92 = tpu.matmul %91, %89, %cst_93 {dimension_numbers = #tpu.dot_dimension_numbers<[1], [0], [0], [1], [0, 0, 1, 1], [], []>} : vector<16x8xf32>, vector<8x384xf32>, vector<16x384xf32> -> vector<16x384xf32>
    %93 = arith.addf %87, %92 : vector<16x384xf32>
    %c1_94 = arith.constant 1 : index
    %c0_95 = arith.constant 0 : index
    %c36_96 = arith.constant 36 : index
    %94 = vector.load %arg1[%c1_94, %c0_95, %c36_96] : memref<2x8x512xf32, #tpu.memory_space<vmem>>, vector<1x8x384xf32>
    %95 = vector.shape_cast %94 : vector<1x8x384xf32> to vector<8x384xf32>
    %c6_97 = arith.constant 6 : index
    %c0_98 = arith.constant 0 : index
    %c0_99 = arith.constant 0 : index
    %96 = vector.load %arg2[%c6_97, %c0_98, %c0_99] : memref<9x16x8xf32, #tpu.memory_space<vmem>>, vector<1x16x8xf32>
    %97 = vector.shape_cast %96 : vector<1x16x8xf32> to vector<16x8xf32>
    %cst_100 = arith.constant dense<0.000000e+00> : vector<16x384xf32>
    %98 = tpu.matmul %97, %95, %cst_100 {dimension_numbers = #tpu.dot_dimension_numbers<[1], [0], [0], [1], [0, 0, 1, 1], [], []>} : vector<16x8xf32>, vector<8x384xf32>, vector<16x384xf32> -> vector<16x384xf32>
    %99 = arith.addf %93, %98 : vector<16x384xf32>
    %c1_101 = arith.constant 1 : index
    %c0_102 = arith.constant 0 : index
    %c37_103 = arith.constant 37 : index
    %100 = vector.load %arg1[%c1_101, %c0_102, %c37_103] : memref<2x8x512xf32, #tpu.memory_space<vmem>>, vector<1x8x384xf32>
    %101 = vector.shape_cast %100 : vector<1x8x384xf32> to vector<8x384xf32>
    %c7_104 = arith.constant 7 : index
    %c0_105 = arith.constant 0 : index
    %c0_106 = arith.constant 0 : index
    %102 = vector.load %arg2[%c7_104, %c0_105, %c0_106] : memref<9x16x8xf32, #tpu.memory_space<vmem>>, vector<1x16x8xf32>
    %103 = vector.shape_cast %102 : vector<1x16x8xf32> to vector<16x8xf32>
    %cst_107 = arith.constant dense<0.000000e+00> : vector<16x384xf32>
    %104 = tpu.matmul %103, %101, %cst_107 {dimension_numbers = #tpu.dot_dimension_numbers<[1], [0], [0], [1], [0, 0, 1, 1], [], []>} : vector<16x8xf32>, vector<8x384xf32>, vector<16x384xf32> -> vector<16x384xf32>
    %105 = arith.addf %99, %104 : vector<16x384xf32>
    %c1_108 = arith.constant 1 : index
    %c0_109 = arith.constant 0 : index
    %c38_110 = arith.constant 38 : index
    %106 = vector.load %arg1[%c1_108, %c0_109, %c38_110] : memref<2x8x512xf32, #tpu.memory_space<vmem>>, vector<1x8x384xf32>
    %107 = vector.shape_cast %106 : vector<1x8x384xf32> to vector<8x384xf32>
    %c8_111 = arith.constant 8 : index
    %c0_112 = arith.constant 0 : index
    %c0_113 = arith.constant 0 : index
    %108 = vector.load %arg2[%c8_111, %c0_112, %c0_113] : memref<9x16x8xf32, #tpu.memory_space<vmem>>, vector<1x16x8xf32>
    %109 = vector.shape_cast %108 : vector<1x16x8xf32> to vector<16x8xf32>
    %cst_114 = arith.constant dense<0.000000e+00> : vector<16x384xf32>
    %110 = tpu.matmul %109, %107, %cst_114 {dimension_numbers = #tpu.dot_dimension_numbers<[1], [0], [0], [1], [0, 0, 1, 1], [], []>} : vector<16x8xf32>, vector<8x384xf32>, vector<16x384xf32> -> vector<16x384xf32>
    %111 = arith.addf %105, %110 : vector<16x384xf32>
    %112 = vector.broadcast %0 : vector<16x1xf32> to vector<16x384xf32>
    %113 = arith.addf %111, %112 : vector<16x384xf32>
    %c1_115 = arith.constant 1 : index
    %c0_116 = arith.constant 0 : index
    %c0_117 = arith.constant 0 : index
    %114 = vector.load %arg4[%c1_115, %c0_116, %c0_117] : memref<2x16x384xf32, #tpu.memory_space<vmem>>, vector<1x16x384xf32>
    %115 = vector.shape_cast %114 : vector<1x16x384xf32> to vector<16x384xf32>
    %116 = vector.shape_cast %113 : vector<16x384xf32> to vector<1x16x384xf32>
    tpu.vector_store %arg4[%c1_115, %c0_116, %c0_117], %116 {strides = array<i32>} : memref<2x16x384xf32, #tpu.memory_space<vmem>>, vector<1x16x384xf32>,
    return
  }
  func.func @transform_0(%arg0: i32) -> (i32, i32, i32) {
    %c0_i32 = arith.constant 0 : i32
    %c0_i32_0 = arith.constant 0 : i32
    %c0_i32_1 = arith.constant 0 : i32
    return %arg0, %c0_i32, %c0_i32_0 : i32, i32, i32
  }
  func.func @transform_1(%arg0: i32) -> (i32, i32, i32) {
    %c0_i32 = arith.constant 0 : i32
    %c0_i32_0 = arith.constant 0 : i32
    %c0_i32_1 = arith.constant 0 : i32
    %c0_i32_2 = arith.constant 0 : i32
    return %c0_i32, %c0_i32_0, %c0_i32_1 : i32, i32, i32
  }
  func.func @transform_2(%arg0: i32) -> (i32, i32) {
    %c0_i32 = arith.constant 0 : i32
    %c0_i32_0 = arith.constant 0 : i32
    %c0_i32_1 = arith.constant 0 : i32
    return %c0_i32, %c0_i32_0 : i32, i32
  }
  func.func @transform_3(%arg0: i32) -> (i32, i32, i32) {
    %c0_i32 = arith.constant 0 : i32
    %c0_i32_0 = arith.constant 0 : i32
    %c0_i32_1 = arith.constant 0 : i32
    return %arg0, %c0_i32, %c0_i32_0 : i32, i32, i32
  }
}

</mosaic_0001>

<llo_original>
// kernel: basic_block_forward.1
$region0: #{basic_block_forward.1}
  #allocation0 [shape = 'u32[]', space=smem, size = 0x4, offset = 0x4, fixed_abs, tag = 'smem constant byte address 0x4 - core index']
  #allocation1 [shape = 'u32[72,128]{1,0:T(1,128)}', space=vmem, size = 0x9000, scoped, tag = 'internal scratch']
  %s0 = inlined_call_operand.vmem [shape: f32[2,8,512], index: 0, kind: input, shape index: {}]
  %s1 = inlined_call_operand.vmem [shape: f32[9,16,8], index: 1, kind: input, shape index: {}]
  %s2 = inlined_call_operand.vmem [shape: f32[16,1], index: 2, kind: input, shape index: {}]
  %s3 = inlined_call_operand.vmem [shape: f32[2,16,384], index: 3, kind: output, shape index: {}]
  %s4 = sld [smem:[#allocation0]]
  $region22: #{basic_block_forward.1} parent=0
    _
  %s6 = ssub.s32 1, %s4
  %s7 = scalar_select 0, %s6, %s4
  // Predicated region
  $region2: #{basic_block_forward.1} parent=0 // pred_check
    _
  $region3: #{basic_block_forward.1} parent=0 // pred_check_branch
    %9 = sbr.rel (0) target = $region5
  $region4: #{basic_block_forward.1} parent=0 // pred_region
    _
  $region5: #{basic_block_forward.1} parent=0 // pred_fallthru
    _
  // Predicated region
  $region6: #{basic_block_forward.1} parent=0 // pred_check
    _
  $region7: #{basic_block_forward.1} parent=0 // pred_check_branch
    %11 = sbr.rel (0) target = $region9
  $region8: #{basic_block_forward.1} parent=0 // pred_region
    _
  $region9: #{basic_block_forward.1} parent=0 // pred_fallthru
    _
  // Predicated region
  $region10: #{basic_block_forward.1} parent=0 // pred_check
    _
  $region11: #{basic_block_forward.1} parent=0 // pred_check_branch
    %13 = sbr.rel (0) target = $region13
  $region12: #{basic_block_forward.1} parent=0 // pred_region
    _
  $region13: #{basic_block_forward.1} parent=0 // pred_fallthru
    _
  %v14 = vld [vmem:[%s2] sm:$0xff]
  %v15 = vld [vmem:[%s2 + $0x8] sm:$0xff]
  %v16 = vld [vmem:[%s0] sm:$0xff]
  %v17 = vld [vmem:[%s0 + $0x8] sm:$0xff]
  %v18 = vld [vmem:[%s0 + $0x10] sm:$0xff]
  %v19 = vld [vmem:[%s1] sm:$0xff]
  %v20 = vld [vmem:[%s1 + $0x8] sm:$0xff]
  %v21 = vld [vmem:[%s0 + $0x18] sm:$0xff]
  %s22 = scalar_lea.vmem %s1, 16
  %v23 = vld [vmem:[%s22] sm:$0xff]
  %v24 = vld [vmem:[%s22 + $0x8] sm:$0xff]
  %29 = vrot.lane.b32.xlu0 %v16, 127
  %v30 = vpop.permute.xlu0 %29
  %31 = vrot.lane.b32.xlu0 %v17, 127
  %v32 = vpop.permute.xlu0 %31
  %33 = vrot.lane.b32.xlu0 %v18, 127
  %v34 = vpop.permute.xlu0 %33
  %35 = vrot.lane.b32.xlu0 %v21, 127
  %v36 = vpop.permute.xlu0 %35
  %vm37 = vcmask 1039360
  %v38 = vsel %vm37, %v30, %v32
  %v39 = vsel %vm37, %v32, %v34
  %v40 = vsel %vm37, %v34, %v36
  %vm44 = vcmask 64512
  %v46 = vsel %vm44, %v23, 0
  %v49 = vsel %vm44, %v24, 0
  %51 = vmatpush.msra.mxu0 0.0
  %52 = vmatpush.msra.mxu0 0.0
  %53 = vmatpush.msra.mxu0 0.0
  %54 = vmatpush.msra.mxu0 0.0
  %55 = vmatpush.msra.mxu0 0.0
  %56 = vmatpush.msra.mxu0 0.0
  %57 = vmatpush.msra.mxu0 0.0
  %58 = vmatpush.msra.mxu0 0.0
  %59 = vmatpush.msra.mxu0 0.0
  %60 = vmatpush.msra.mxu0 0.0
  %61 = vmatpush.msra.mxu0 0.0
  %62 = vmatpush.msra.mxu0 0.0
  %63 = vmatpush.msra.mxu0 0.0
  %64 = vmatpush.msra.mxu0 0.0
  %65 = vmatpush.msra.mxu0 0.0
  %66 = vmatpush.msra.mxu0 %v38
  %67 = vmatmul.f32.gmra.mxu0 %v46
  %v68 = vpop.f32.mrf.mxu0
  %v69 = vadd.f32 0.0, %v68
  %70 = vmatmul.f32.gmra.mxu0 %v49
  %v71 = vpop.f32.mrf.mxu0
  %v72 = vadd.f32 0.0, %v71
  %73 = vdwg.mxu0
  %74 = vmatpush.msra.mxu0 0.0
  %75 = vmatpush.msra.mxu0 0.0
  %76 = vmatpush.msra.mxu0 0.0
  %77 = vmatpush.msra.mxu0 0.0
  %78 = vmatpush.msra.mxu0 0.0
  %79 = vmatpush.msra.mxu0 0.0
  %80 = vmatpush.msra.mxu0 0.0
  %81 = vmatpush.msra.mxu0 0.0
  %82 = vmatpush.msra.mxu0 0.0
  %83 = vmatpush.msra.mxu0 0.0
  %84 = vmatpush.msra.mxu0 0.0
  %85 = vmatpush.msra.mxu0 0.0
  %86 = vmatpush.msra.mxu0 0.0
  %87 = vmatpush.msra.mxu0 0.0
  %88 = vmatpush.msra.mxu0 0.0
  %89 = vmatpush.msra.mxu0 %v39
  %90 = vmatmul.f32.gmra.mxu0 %v46
  %v91 = vpop.f32.mrf.mxu0
  %v92 = vadd.f32 0.0, %v91
  %93 = vmatmul.f32.gmra.mxu0 %v49
  %v94 = vpop.f32.mrf.mxu0
  %v95 = vadd.f32 0.0, %v94
  %96 = vdwg.mxu0
  %97 = vmatpush.msra.mxu0 0.0
  %98 = vmatpush.msra.mxu0 0.0
  %99 = vmatpush.msra.mxu0 0.0
  %100 = vmatpush.msra.mxu0 0.0
  %101 = vmatpush.msra.mxu0 0.0
  %102 = vmatpush.msra.mxu0 0.0
  %103 = vmatpush.msra.mxu0 0.0
  %104 = vmatpush.msra.mxu0 0.0
  %105 = vmatpush.msra.mxu0 0.0
  %106 = vmatpush.msra.mxu0 0.0
  %107 = vmatpush.msra.mxu0 0.0
  %108 = vmatpush.msra.mxu0 0.0
  %109 = vmatpush.msra.mxu0 0.0
  %110 = vmatpush.msra.mxu0 0.0
  %111 = vmatpush.msra.mxu0 0.0
  %112 = vmatpush.msra.mxu0 %v40
  %113 = vmatmul.f32.gmra.mxu0 %v46
  %v114 = vpop.f32.mrf.mxu0
  %v115 = vadd.f32 0.0, %v114
  %116 = vmatmul.f32.gmra.mxu0 %v49
  %v117 = vpop.f32.mrf.mxu0
  %v118 = vadd.f32 0.0, %v117
  %119 = vdwg.mxu0
  %v121 = vsel %vm44, %v19, 0
  %v124 = vsel %vm44, %v20, 0
  %126 = vmatpush.msra.mxu0 0.0
  %127 = vmatpush.msra.mxu0 0.0
  %128 = vmatpush.msra.mxu0 0.0
  %129 = vmatpush.msra.mxu0 0.0
  %130 = vmatpush.msra.mxu0 0.0
  %131 = vmatpush.msra.mxu0 0.0
  %132 = vmatpush.msra.mxu0 0.0
  %133 = vmatpush.msra.mxu0 0.0
  %134 = vmatpush.msra.mxu0 0.0
  %135 = vmatpush.msra.mxu0 0.0
  %136 = vmatpush.msra.mxu0 0.0
  %137 = vmatpush.msra.mxu0 0.0
  %138 = vmatpush.msra.mxu0 0.0
  %139 = vmatpush.msra.mxu0 0.0
  %140 = vmatpush.msra.mxu0 0.0
  %141 = vmatpush.msra.mxu0 %v16
  %142 = vmatmul.f32.gmra.mxu0 %v121
  %v143 = vpop.f32.mrf.mxu0
  %v144 = vadd.f32 %v69, %v143
  %145 = vmatmul.f32.gmra.mxu0 %v124
  %v146 = vpop.f32.mrf.mxu0
  %v147 = vadd.f32 %v72, %v146
  %148 = vdwg.mxu0
  %149 = vmatpush.msra.mxu0 0.0
  %150 = vmatpush.msra.mxu0 0.0
  %151 = vmatpush.msra.mxu0 0.0
  %152 = vmatpush.msra.mxu0 0.0
  %153 = vmatpush.msra.mxu0 0.0
  %154 = vmatpush.msra.mxu0 0.0
  %155 = vmatpush.msra.mxu0 0.0
  %156 = vmatpush.msra.mxu0 0.0
  %157 = vmatpush.msra.mxu0 0.0
  %158 = vmatpush.msra.mxu0 0.0
  %159 = vmatpush.msra.mxu0 0.0
  %160 = vmatpush.msra.mxu0 0.0
  %161 = vmatpush.msra.mxu0 0.0
  %162 = vmatpush.msra.mxu0 0.0
  %163 = vmatpush.msra.mxu0 0.0
  %164 = vmatpush.msra.mxu0 %v17
  %165 = vmatmul.f32.gmra.mxu0 %v121
  %v166 = vpop.f32.mrf.mxu0
  %v167 = vadd.f32 %v92, %v166
  %168 = vmatmul.f32.gmra.mxu0 %v124
  %v169 = vpop.f32.mrf.mxu0
  %v170 = vadd.f32 %v95, %v169
  %171 = vdwg.mxu0
  %172 = vmatpush.msra.mxu0 0.0
  %173 = vmatpush.msra.mxu0 0.0
  %174 = vmatpush.msra.mxu0 0.0
  %175 = vmatpush.msra.mxu0 0.0
  %176 = vmatpush.msra.mxu0 0.0
  %177 = vmatpush.msra.mxu0 0.0
  %178 = vmatpush.msra.mxu0 0.0
  %179 = vmatpush.msra.mxu0 0.0
  %180 = vmatpush.msra.mxu0 0.0
  %181 = vmatpush.msra.mxu0 0.0
  %182 = vmatpush.msra.mxu0 0.0
  %183 = vmatpush.msra.mxu0 0.0
  %184 = vmatpush.msra.mxu0 0.0
  %185 = vmatpush.msra.mxu0 0.0
  %186 = vmatpush.msra.mxu0 0.0
  %187 = vmatpush.msra.mxu0 %v18
  %188 = vmatmul.f32.gmra.mxu0 %v121
  %v189 = vpop.f32.mrf.mxu0
  %v190 = vadd.f32 %v115, %v189
  %191 = vmatmul.f32.gmra.mxu0 %v124
  %v192 = vpop.f32.mrf.mxu0
  %v193 = vadd.f32 %v118, %v192
  %194 = vdwg.mxu0
  %s195 = scalar_lea.vmem %s1, 32
  %v196 = vld [vmem:[%s195] sm:$0xff]
  %v197 = vld [vmem:[%s195 + $0x8] sm:$0xff]
  %198 = vrot.lane.b32.xlu0 %v16, 126
  %v199 = vpop.permute.xlu0 %198
  %200 = vrot.lane.b32.xlu0 %v17, 126
  %v201 = vpop.permute.xlu0 %200
  %202 = vrot.lane.b32.xlu0 %v18, 126
  %v203 = vpop.permute.xlu0 %202
  %204 = vrot.lane.b32.xlu0 %v21, 126
  %v205 = vpop.permute.xlu0 %204
  %vm206 = vcmask 1031168
  %v207 = vsel %vm206, %v199, %v201
  %v208 = vsel %vm206, %v201, %v203
  %v209 = vsel %vm206, %v203, %v205
  %v214 = vsel %vm44, %v196, 0
  %v217 = vsel %vm44, %v197, 0
  %219 = vmatpush.msra.mxu0 0.0
  %220 = vmatpush.msra.mxu0 0.0
  %221 = vmatpush.msra.mxu0 0.0
  %222 = vmatpush.msra.mxu0 0.0
  %223 = vmatpush.msra.mxu0 0.0
  %224 = vmatpush.msra.mxu0 0.0
  %225 = vmatpush.msra.mxu0 0.0
  %226 = vmatpush.msra.mxu0 0.0
  %227 = vmatpush.msra.mxu0 0.0
  %228 = vmatpush.msra.mxu0 0.0
  %229 = vmatpush.msra.mxu0 0.0
  %230 = vmatpush.msra.mxu0 0.0
  %231 = vmatpush.msra.mxu0 0.0
  %232 = vmatpush.msra.mxu0 0.0
  %233 = vmatpush.msra.mxu0 0.0
  %234 = vmatpush.msra.mxu0 %v207
  %235 = vmatmul.f32.gmra.mxu0 %v214
  %v236 = vpop.f32.mrf.mxu0
  %v237 = vadd.f32 0.0, %v236
  %238 = vmatmul.f32.gmra.mxu0 %v217
  %v239 = vpop.f32.mrf.mxu0
  %v240 = vadd.f32 0.0, %v239
  %241 = vdwg.mxu0
  %242 = vmatpush.msra.mxu0 0.0
  %243 = vmatpush.msra.mxu0 0.0
  %244 = vmatpush.msra.mxu0 0.0
  %245 = vmatpush.msra.mxu0 0.0
  %246 = vmatpush.msra.mxu0 0.0
  %247 = vmatpush.msra.mxu0 0.0
  %248 = vmatpush.msra.mxu0 0.0
  %249 = vmatpush.msra.mxu0 0.0
  %250 = vmatpush.msra.mxu0 0.0
  %251 = vmatpush.msra.mxu0 0.0
  %252 = vmatpush.msra.mxu0 0.0
  %253 = vmatpush.msra.mxu0 0.0
  %254 = vmatpush.msra.mxu0 0.0
  %255 = vmatpush.msra.mxu0 0.0
  %256 = vmatpush.msra.mxu0 0.0
  %257 = vmatpush.msra.mxu0 %v208
  %258 = vmatmul.f32.gmra.mxu0 %v214
  %v259 = vpop.f32.mrf.mxu0
  %v260 = vadd.f32 0.0, %v259
  %261 = vmatmul.f32.gmra.mxu0 %v217
  %v262 = vpop.f32.mrf.mxu0
  %v263 = vadd.f32 0.0, %v262
  %264 = vdwg.mxu0
  %265 = vmatpush.msra.mxu0 0.0
  %266 = vmatpush.msra.mxu0 0.0
  %267 = vmatpush.msra.mxu0 0.0
  %268 = vmatpush.msra.mxu0 0.0
  %269 = vmatpush.msra.mxu0 0.0
  %270 = vmatpush.msra.mxu0 0.0
  %271 = vmatpush.msra.mxu0 0.0
  %272 = vmatpush.msra.mxu0 0.0
  %273 = vmatpush.msra.mxu0 0.0
  %274 = vmatpush.msra.mxu0 0.0
  %275 = vmatpush.msra.mxu0 0.0
  %276 = vmatpush.msra.mxu0 0.0
  %277 = vmatpush.msra.mxu0 0.0
  %278 = vmatpush.msra.mxu0 0.0
  %279 = vmatpush.msra.mxu0 0.0
  %280 = vmatpush.msra.mxu0 %v209
  %281 = vmatmul.f32.gmra.mxu0 %v214
  %v282 = vpop.f32.mrf.mxu0
  %v283 = vadd.f32 0.0, %v282
  %284 = vmatmul.f32.gmra.mxu0 %v217
  %v285 = vpop.f32.mrf.mxu0
  %v286 = vadd.f32 0.0, %v285
  %287 = vdwg.mxu0
  %v288 = vadd.f32 %v144, %v237
  %v289 = vadd.f32 %v167, %v260
  %v290 = vadd.f32 %v190, %v283
  %v291 = vadd.f32 %v147, %v240
  %v292 = vadd.f32 %v170, %v263
  %v293 = vadd.f32 %v193, %v286
  %s294 = scalar_lea.vmem %s1, 48
  %v295 = vld [vmem:[%s294] sm:$0xff]
  %v296 = vld [vmem:[%s294 + $0x8] sm:$0xff]
  %297 = vrot.lane.b32.xlu0 %v16, 110
  %v298 = vpop.permute.xlu0 %297
  %299 = vrot.lane.b32.xlu0 %v17, 110
  %v300 = vpop.permute.xlu0 %299
  %301 = vrot.lane.b32.xlu0 %v18, 110
  %v302 = vpop.permute.xlu0 %301
  %303 = vrot.lane.b32.xlu0 %v21, 110
  %v304 = vpop.permute.xlu0 %303
  %vm305 = vcmask 900096
  %v306 = vsel %vm305, %v298, %v300
  %v307 = vsel %vm305, %v300, %v302
  %v308 = vsel %vm305, %v302, %v304
  %v313 = vsel %vm44, %v295, 0
  %v316 = vsel %vm44, %v296, 0
  %318 = vmatpush.msra.mxu0 0.0
  %319 = vmatpush.msra.mxu0 0.0
  %320 = vmatpush.msra.mxu0 0.0
  %321 = vmatpush.msra.mxu0 0.0
  %322 = vmatpush.msra.mxu0 0.0
  %323 = vmatpush.msra.mxu0 0.0
  %324 = vmatpush.msra.mxu0 0.0
  %325 = vmatpush.msra.mxu0 0.0
  %326 = vmatpush.msra.mxu0 0.0
  %327 = vmatpush.msra.mxu0 0.0
  %328 = vmatpush.msra.mxu0 0.0
  %329 = vmatpush.msra.mxu0 0.0
  %330 = vmatpush.msra.mxu0 0.0
  %331 = vmatpush.msra.mxu0 0.0
  %332 = vmatpush.msra.mxu0 0.0
  %333 = vmatpush.msra.mxu0 %v306
  %334 = vmatmul.f32.gmra.mxu0 %v313
  %v335 = vpop.f32.mrf.mxu0
  %v336 = vadd.f32 0.0, %v335
  %337 = vmatmul.f32.gmra.mxu0 %v316
  %v338 = vpop.f32.mrf.mxu0
  %v339 = vadd.f32 0.0, %v338
  %340 = vdwg.mxu0
  %341 = vmatpush.msra.mxu0 0.0
  %342 = vmatpush.msra.mxu0 0.0
  %343 = vmatpush.msra.mxu0 0.0
  %344 = vmatpush.msra.mxu0 0.0
  %345 = vmatpush.msra.mxu0 0.0
  %346 = vmatpush.msra.mxu0 0.0
  %347 = vmatpush.msra.mxu0 0.0
  %348 = vmatpush.msra.mxu0 0.0
  %349 = vmatpush.msra.mxu0 0.0
  %350 = vmatpush.msra.mxu0 0.0
  %351 = vmatpush.msra.mxu0 0.0
  %352 = vmatpush.msra.mxu0 0.0
  %353 = vmatpush.msra.mxu0 0.0
  %354 = vmatpush.msra.mxu0 0.0
  %355 = vmatpush.msra.mxu0 0.0
  %356 = vmatpush.msra.mxu0 %v307
  %357 = vmatmul.f32.gmra.mxu0 %v313
  %v358 = vpop.f32.mrf.mxu0
  %v359 = vadd.f32 0.0, %v358
  %360 = vmatmul.f32.gmra.mxu0 %v316
  %v361 = vpop.f32.mrf.mxu0
  %v362 = vadd.f32 0.0, %v361
  %363 = vdwg.mxu0
  %364 = vmatpush.msra.mxu0 0.0
  %365 = vmatpush.msra.mxu0 0.0
  %366 = vmatpush.msra.mxu0 0.0
  %367 = vmatpush.msra.mxu0 0.0
  %368 = vmatpush.msra.mxu0 0.0
  %369 = vmatpush.msra.mxu0 0.0
  %370 = vmatpush.msra.mxu0 0.0
  %371 = vmatpush.msra.mxu0 0.0
  %372 = vmatpush.msra.mxu0 0.0
  %373 = vmatpush.msra.mxu0 0.0
  %374 = vmatpush.msra.mxu0 0.0
  %375 = vmatpush.msra.mxu0 0.0
  %376 = vmatpush.msra.mxu0 0.0
  %377 = vmatpush.msra.mxu0 0.0
  %378 = vmatpush.msra.mxu0 0.0
  %379 = vmatpush.msra.mxu0 %v308
  %380 = vmatmul.f32.gmra.mxu0 %v313
  %v381 = vpop.f32.mrf.mxu0
  %v382 = vadd.f32 0.0, %v381
  %383 = vmatmul.f32.gmra.mxu0 %v316
  %v384 = vpop.f32.mrf.mxu0
  %v385 = vadd.f32 0.0, %v384
  %386 = vdwg.mxu0
  %v387 = vadd.f32 %v288, %v336
  %v388 = vadd.f32 %v289, %v359
  %v389 = vadd.f32 %v290, %v382
  %v390 = vadd.f32 %v291, %v339
  %v391 = vadd.f32 %v292, %v362
  %v392 = vadd.f32 %v293, %v385
  %s393 = scalar_lea.vmem %s1, 64
  %v394 = vld [vmem:[%s393] sm:$0xff]
  %v395 = vld [vmem:[%s393 + $0x8] sm:$0xff]
  %396 = vrot.lane.b32.xlu0 %v16, 109
  %v397 = vpop.permute.xlu0 %396
  %398 = vrot.lane.b32.xlu0 %v17, 109
  %v399 = vpop.permute.xlu0 %398
  %400 = vrot.lane.b32.xlu0 %v18, 109
  %v401 = vpop.permute.xlu0 %400
  %402 = vrot.lane.b32.xlu0 %v21, 109
  %v403 = vpop.permute.xlu0 %402
  %vm404 = vcmask 891904
  %v405 = vsel %vm404, %v397, %v399
  %v406 = vsel %vm404, %v399, %v401
  %v407 = vsel %vm404, %v401, %v403
  %v412 = vsel %vm44, %v394, 0
  %v415 = vsel %vm44, %v395, 0
  %417 = vmatpush.msra.mxu0 0.0
  %418 = vmatpush.msra.mxu0 0.0
  %419 = vmatpush.msra.mxu0 0.0
  %420 = vmatpush.msra.mxu0 0.0
  %421 = vmatpush.msra.mxu0 0.0
  %422 = vmatpush.msra.mxu0 0.0
  %423 = vmatpush.msra.mxu0 0.0
  %424 = vmatpush.msra.mxu0 0.0
  %425 = vmatpush.msra.mxu0 0.0
  %426 = vmatpush.msra.mxu0 0.0
  %427 = vmatpush.msra.mxu0 0.0
  %428 = vmatpush.msra.mxu0 0.0
  %429 = vmatpush.msra.mxu0 0.0
  %430 = vmatpush.msra.mxu0 0.0
  %431 = vmatpush.msra.mxu0 0.0
  %432 = vmatpush.msra.mxu0 %v405
  %433 = vmatmul.f32.gmra.mxu0 %v412
  %v434 = vpop.f32.mrf.mxu0
  %v435 = vadd.f32 0.0, %v434
  %436 = vmatmul.f32.gmra.mxu0 %v415
  %v437 = vpop.f32.mrf.mxu0
  %v438 = vadd.f32 0.0, %v437
  %439 = vdwg.mxu0
  %440 = vmatpush.msra.mxu0 0.0
  %441 = vmatpush.msra.mxu0 0.0
  %442 = vmatpush.msra.mxu0 0.0
  %443 = vmatpush.msra.mxu0 0.0
  %444 = vmatpush.msra.mxu0 0.0
  %445 = vmatpush.msra.mxu0 0.0
  %446 = vmatpush.msra.mxu0 0.0
  %447 = vmatpush.msra.mxu0 0.0
  %448 = vmatpush.msra.mxu0 0.0
  %449 = vmatpush.msra.mxu0 0.0
  %450 = vmatpush.msra.mxu0 0.0
  %451 = vmatpush.msra.mxu0 0.0
  %452 = vmatpush.msra.mxu0 0.0
  %453 = vmatpush.msra.mxu0 0.0
  %454 = vmatpush.msra.mxu0 0.0
  %455 = vmatpush.msra.mxu0 %v406
  %456 = vmatmul.f32.gmra.mxu0 %v412
  %v457 = vpop.f32.mrf.mxu0
  %v458 = vadd.f32 0.0, %v457
  %459 = vmatmul.f32.gmra.mxu0 %v415
  %v460 = vpop.f32.mrf.mxu0
  %v461 = vadd.f32 0.0, %v460
  %462 = vdwg.mxu0
  %463 = vmatpush.msra.mxu0 0.0
  %464 = vmatpush.msra.mxu0 0.0
  %465 = vmatpush.msra.mxu0 0.0
  %466 = vmatpush.msra.mxu0 0.0
  %467 = vmatpush.msra.mxu0 0.0
  %468 = vmatpush.msra.mxu0 0.0
  %469 = vmatpush.msra.mxu0 0.0
  %470 = vmatpush.msra.mxu0 0.0
  %471 = vmatpush.msra.mxu0 0.0
  %472 = vmatpush.msra.mxu0 0.0
  %473 = vmatpush.msra.mxu0 0.0
  %474 = vmatpush.msra.mxu0 0.0
  %475 = vmatpush.msra.mxu0 0.0
  %476 = vmatpush.msra.mxu0 0.0
  %477 = vmatpush.msra.mxu0 0.0
  %478 = vmatpush.msra.mxu0 %v407
  %479 = vmatmul.f32.gmra.mxu0 %v412
  %v480 = vpop.f32.mrf.mxu0
  %v481 = vadd.f32 0.0, %v480
  %482 = vmatmul.f32.gmra.mxu0 %v415
  %v483 = vpop.f32.mrf.mxu0
  %v484 = vadd.f32 0.0, %v483
  %485 = vdwg.mxu0
  %v486 = vadd.f32 %v387, %v435
  %v487 = vadd.f32 %v388, %v458
  %v488 = vadd.f32 %v389, %v481
  %v489 = vadd.f32 %v390, %v438
  %v490 = vadd.f32 %v391, %v461
  %v491 = vadd.f32 %v392, %v484
  %s492 = scalar_lea.vmem %s1, 80
  %v493 = vld [vmem:[%s492] sm:$0xff]
  %v494 = vld [vmem:[%s492 + $0x8] sm:$0xff]
  %495 = vrot.lane.b32.xlu0 %v16, 108
  %v496 = vpop.permute.xlu0 %495
  %497 = vrot.lane.b32.xlu0 %v17, 108
  %v498 = vpop.permute.xlu0 %497
  %499 = vrot.lane.b32.xlu0 %v18, 108
  %v500 = vpop.permute.xlu0 %499
  %501 = vrot.lane.b32.xlu0 %v21, 108
  %v502 = vpop.permute.xlu0 %501
  %vm503 = vcmask 883712
  %v504 = vsel %vm503, %v496, %v498
  %v505 = vsel %vm503, %v498, %v500
  %v506 = vsel %vm503, %v500, %v502
  %v511 = vsel %vm44, %v493, 0
  %v514 = vsel %vm44, %v494, 0
  %516 = vmatpush.msra.mxu0 0.0
  %517 = vmatpush.msra.mxu0 0.0
  %518 = vmatpush.msra.mxu0 0.0
  %519 = vmatpush.msra.mxu0 0.0
  %520 = vmatpush.msra.mxu0 0.0
  %521 = vmatpush.msra.mxu0 0.0
  %522 = vmatpush.msra.mxu0 0.0
  %523 = vmatpush.msra.mxu0 0.0
  %524 = vmatpush.msra.mxu0 0.0
  %525 = vmatpush.msra.mxu0 0.0
  %526 = vmatpush.msra.mxu0 0.0
  %527 = vmatpush.msra.mxu0 0.0
  %528 = vmatpush.msra.mxu0 0.0
  %529 = vmatpush.msra.mxu0 0.0
  %530 = vmatpush.msra.mxu0 0.0
  %531 = vmatpush.msra.mxu0 %v504
  %532 = vmatmul.f32.gmra.mxu0 %v511
  %v533 = vpop.f32.mrf.mxu0
  %v534 = vadd.f32 0.0, %v533
  %535 = vmatmul.f32.gmra.mxu0 %v514
  %v536 = vpop.f32.mrf.mxu0
  %v537 = vadd.f32 0.0, %v536
  %538 = vdwg.mxu0
  %539 = vmatpush.msra.mxu0 0.0
  %540 = vmatpush.msra.mxu0 0.0
  %541 = vmatpush.msra.mxu0 0.0
  %542 = vmatpush.msra.mxu0 0.0
  %543 = vmatpush.msra.mxu0 0.0
  %544 = vmatpush.msra.mxu0 0.0
  %545 = vmatpush.msra.mxu0 0.0
  %546 = vmatpush.msra.mxu0 0.0
  %547 = vmatpush.msra.mxu0 0.0
  %548 = vmatpush.msra.mxu0 0.0
  %549 = vmatpush.msra.mxu0 0.0
  %550 = vmatpush.msra.mxu0 0.0
  %551 = vmatpush.msra.mxu0 0.0
  %552 = vmatpush.msra.mxu0 0.0
  %553 = vmatpush.msra.mxu0 0.0
  %554 = vmatpush.msra.mxu0 %v505
  %555 = vmatmul.f32.gmra.mxu0 %v511
  %v556 = vpop.f32.mrf.mxu0
  %v557 = vadd.f32 0.0, %v556
  %558 = vmatmul.f32.gmra.mxu0 %v514
  %v559 = vpop.f32.mrf.mxu0
  %v560 = vadd.f32 0.0, %v559
  %561 = vdwg.mxu0
  %562 = vmatpush.msra.mxu0 0.0
  %563 = vmatpush.msra.mxu0 0.0
  %564 = vmatpush.msra.mxu0 0.0
  %565 = vmatpush.msra.mxu0 0.0
  %566 = vmatpush.msra.mxu0 0.0
  %567 = vmatpush.msra.mxu0 0.0
  %568 = vmatpush.msra.mxu0 0.0
  %569 = vmatpush.msra.mxu0 0.0
  %570 = vmatpush.msra.mxu0 0.0
  %571 = vmatpush.msra.mxu0 0.0
  %572 = vmatpush.msra.mxu0 0.0
  %573 = vmatpush.msra.mxu0 0.0
  %574 = vmatpush.msra.mxu0 0.0
  %575 = vmatpush.msra.mxu0 0.0
  %576 = vmatpush.msra.mxu0 0.0
  %577 = vmatpush.msra.mxu0 %v506
  %578 = vmatmul.f32.gmra.mxu0 %v511
  %v579 = vpop.f32.mrf.mxu0
  %v580 = vadd.f32 0.0, %v579
  %581 = vmatmul.f32.gmra.mxu0 %v514
  %v582 = vpop.f32.mrf.mxu0
  %v583 = vadd.f32 0.0, %v582
  %584 = vdwg.mxu0
  %v585 = vadd.f32 %v486, %v534
  %v586 = vadd.f32 %v487, %v557
  %v587 = vadd.f32 %v488, %v580
  %v588 = vadd.f32 %v489, %v537
  %v589 = vadd.f32 %v490, %v560
  %v590 = vadd.f32 %v491, %v583
  %s591 = scalar_lea.vmem %s1, 96
  %v592 = vld [vmem:[%s591] sm:$0xff]
  %v593 = vld [vmem:[%s591 + $0x8] sm:$0xff]
  %594 = vrot.lane.b32.xlu0 %v16, 92
  %v595 = vpop.permute.xlu0 %594
  %596 = vrot.lane.b32.xlu0 %v17, 92
  %v597 = vpop.permute.xlu0 %596
  %598 = vrot.lane.b32.xlu0 %v18, 92
  %v599 = vpop.permute.xlu0 %598
  %600 = vrot.lane.b32.xlu0 %v21, 92
  %v601 = vpop.permute.xlu0 %600
  %vm602 = vcmask 752640
  %v603 = vsel %vm602, %v595, %v597
  %v604 = vsel %vm602, %v597, %v599
  %v605 = vsel %vm602, %v599, %v601
  %v610 = vsel %vm44, %v592, 0
  %v613 = vsel %vm44, %v593, 0
  %615 = vmatpush.msra.mxu0 0.0
  %616 = vmatpush.msra.mxu0 0.0
  %617 = vmatpush.msra.mxu0 0.0
  %618 = vmatpush.msra.mxu0 0.0
  %619 = vmatpush.msra.mxu0 0.0
  %620 = vmatpush.msra.mxu0 0.0
  %621 = vmatpush.msra.mxu0 0.0
  %622 = vmatpush.msra.mxu0 0.0
  %623 = vmatpush.msra.mxu0 0.0
  %624 = vmatpush.msra.mxu0 0.0
  %625 = vmatpush.msra.mxu0 0.0
  %626 = vmatpush.msra.mxu0 0.0
  %627 = vmatpush.msra.mxu0 0.0
  %628 = vmatpush.msra.mxu0 0.0
  %629 = vmatpush.msra.mxu0 0.0
  %630 = vmatpush.msra.mxu0 %v603
  %631 = vmatmul.f32.gmra.mxu0 %v610
  %v632 = vpop.f32.mrf.mxu0
  %v633 = vadd.f32 0.0, %v632
  %634 = vmatmul.f32.gmra.mxu0 %v613
  %v635 = vpop.f32.mrf.mxu0
  %v636 = vadd.f32 0.0, %v635
  %637 = vdwg.mxu0
  %638 = vmatpush.msra.mxu0 0.0
  %639 = vmatpush.msra.mxu0 0.0
  %640 = vmatpush.msra.mxu0 0.0
  %641 = vmatpush.msra.mxu0 0.0
  %642 = vmatpush.msra.mxu0 0.0
  %643 = vmatpush.msra.mxu0 0.0
  %644 = vmatpush.msra.mxu0 0.0
  %645 = vmatpush.msra.mxu0 0.0
  %646 = vmatpush.msra.mxu0 0.0
  %647 = vmatpush.msra.mxu0 0.0
  %648 = vmatpush.msra.mxu0 0.0
  %649 = vmatpush.msra.mxu0 0.0
  %650 = vmatpush.msra.mxu0 0.0
  %651 = vmatpush.msra.mxu0 0.0
  %652 = vmatpush.msra.mxu0 0.0
  %653 = vmatpush.msra.mxu0 %v604
  %654 = vmatmul.f32.gmra.mxu0 %v610
  %v655 = vpop.f32.mrf.mxu0
  %v656 = vadd.f32 0.0, %v655
  %657 = vmatmul.f32.gmra.mxu0 %v613
  %v658 = vpop.f32.mrf.mxu0
  %v659 = vadd.f32 0.0, %v658
  %660 = vdwg.mxu0
  %661 = vmatpush.msra.mxu0 0.0
  %662 = vmatpush.msra.mxu0 0.0
  %663 = vmatpush.msra.mxu0 0.0
  %664 = vmatpush.msra.mxu0 0.0
  %665 = vmatpush.msra.mxu0 0.0
  %666 = vmatpush.msra.mxu0 0.0
  %667 = vmatpush.msra.mxu0 0.0
  %668 = vmatpush.msra.mxu0 0.0
  %669 = vmatpush.msra.mxu0 0.0
  %670 = vmatpush.msra.mxu0 0.0
  %671 = vmatpush.msra.mxu0 0.0
  %672 = vmatpush.msra.mxu0 0.0
  %673 = vmatpush.msra.mxu0 0.0
  %674 = vmatpush.msra.mxu0 0.0
  %675 = vmatpush.msra.mxu0 0.0
  %676 = vmatpush.msra.mxu0 %v605
  %677 = vmatmul.f32.gmra.mxu0 %v610
  %v678 = vpop.f32.mrf.mxu0
  %v679 = vadd.f32 0.0, %v678
  %680 = vmatmul.f32.gmra.mxu0 %v613
  %v681 = vpop.f32.mrf.mxu0
  %v682 = vadd.f32 0.0, %v681
  %683 = vdwg.mxu0
  %v684 = vadd.f32 %v585, %v633
  %v685 = vadd.f32 %v586, %v656
  %v686 = vadd.f32 %v587, %v679
  %v687 = vadd.f32 %v588, %v636
  %v688 = vadd.f32 %v589, %v659
  %v689 = vadd.f32 %v590, %v682
  %s690 = scalar_lea.vmem %s1, 112
  %v691 = vld [vmem:[%s690] sm:$0xff]
  %v692 = vld [vmem:[%s690 + $0x8] sm:$0xff]
  %693 = vrot.lane.b32.xlu0 %v16, 91
  %v694 = vpop.permute.xlu0 %693
  %695 = vrot.lane.b32.xlu0 %v17, 91
  %v696 = vpop.permute.xlu0 %695
  %697 = vrot.lane.b32.xlu0 %v18, 91
  %v698 = vpop.permute.xlu0 %697
  %699 = vrot.lane.b32.xlu0 %v21, 91
  %v700 = vpop.permute.xlu0 %699
  %vm701 = vcmask 744448
  %v702 = vsel %vm701, %v694, %v696
  %v703 = vsel %vm701, %v696, %v698
  %v704 = vsel %vm701, %v698, %v700
  %v709 = vsel %vm44, %v691, 0
  %v712 = vsel %vm44, %v692, 0
  %714 = vmatpush.msra.mxu0 0.0
  %715 = vmatpush.msra.mxu0 0.0
  %716 = vmatpush.msra.mxu0 0.0
  %717 = vmatpush.msra.mxu0 0.0
  %718 = vmatpush.msra.mxu0 0.0
  %719 = vmatpush.msra.mxu0 0.0
  %720 = vmatpush.msra.mxu0 0.0
  %721 = vmatpush.msra.mxu0 0.0
  %722 = vmatpush.msra.mxu0 0.0
  %723 = vmatpush.msra.mxu0 0.0
  %724 = vmatpush.msra.mxu0 0.0
  %725 = vmatpush.msra.mxu0 0.0
  %726 = vmatpush.msra.mxu0 0.0
  %727 = vmatpush.msra.mxu0 0.0
  %728 = vmatpush.msra.mxu0 0.0
  %729 = vmatpush.msra.mxu0 %v702
  %730 = vmatmul.f32.gmra.mxu0 %v709
  %v731 = vpop.f32.mrf.mxu0
  %v732 = vadd.f32 0.0, %v731
  %733 = vmatmul.f32.gmra.mxu0 %v712
  %v734 = vpop.f32.mrf.mxu0
  %v735 = vadd.f32 0.0, %v734
  %736 = vdwg.mxu0
  %737 = vmatpush.msra.mxu0 0.0
  %738 = vmatpush.msra.mxu0 0.0
  %739 = vmatpush.msra.mxu0 0.0
  %740 = vmatpush.msra.mxu0 0.0
  %741 = vmatpush.msra.mxu0 0.0
  %742 = vmatpush.msra.mxu0 0.0
  %743 = vmatpush.msra.mxu0 0.0
  %744 = vmatpush.msra.mxu0 0.0
  %745 = vmatpush.msra.mxu0 0.0
  %746 = vmatpush.msra.mxu0 0.0
  %747 = vmatpush.msra.mxu0 0.0
  %748 = vmatpush.msra.mxu0 0.0
  %749 = vmatpush.msra.mxu0 0.0
  %750 = vmatpush.msra.mxu0 0.0
  %751 = vmatpush.msra.mxu0 0.0
  %752 = vmatpush.msra.mxu0 %v703
  %753 = vmatmul.f32.gmra.mxu0 %v709
  %v754 = vpop.f32.mrf.mxu0
  %v755 = vadd.f32 0.0, %v754
  %756 = vmatmul.f32.gmra.mxu0 %v712
  %v757 = vpop.f32.mrf.mxu0
  %v758 = vadd.f32 0.0, %v757
  %759 = vdwg.mxu0
  %760 = vmatpush.msra.mxu0 0.0
  %761 = vmatpush.msra.mxu0 0.0
  %762 = vmatpush.msra.mxu0 0.0
  %763 = vmatpush.msra.mxu0 0.0
  %764 = vmatpush.msra.mxu0 0.0
  %765 = vmatpush.msra.mxu0 0.0
  %766 = vmatpush.msra.mxu0 0.0
  %767 = vmatpush.msra.mxu0 0.0
  %768 = vmatpush.msra.mxu0 0.0
  %769 = vmatpush.msra.mxu0 0.0
  %770 = vmatpush.msra.mxu0 0.0
  %771 = vmatpush.msra.mxu0 0.0
  %772 = vmatpush.msra.mxu0 0.0
  %773 = vmatpush.msra.mxu0 0.0
  %774 = vmatpush.msra.mxu0 0.0
  %775 = vmatpush.msra.mxu0 %v704
  %776 = vmatmul.f32.gmra.mxu0 %v709
  %v777 = vpop.f32.mrf.mxu0
  %v778 = vadd.f32 0.0, %v777
  %779 = vmatmul.f32.gmra.mxu0 %v712
  %v780 = vpop.f32.mrf.mxu0
  %v781 = vadd.f32 0.0, %v780
  %782 = vdwg.mxu0
  %v783 = vadd.f32 %v684, %v732
  %v784 = vadd.f32 %v685, %v755
  %v785 = vadd.f32 %v686, %v778
  %v786 = vadd.f32 %v687, %v735
  %v787 = vadd.f32 %v688, %v758
  %v788 = vadd.f32 %v689, %v781
  %s789 = scalar_lea.vmem %s1, 128
  %v790 = vld [vmem:[%s789] sm:$0xff]
  %v791 = vld [vmem:[%s789 + $0x8] sm:$0xff]
  %792 = vrot.lane.b32.xlu0 %v16, 90
  %v793 = vpop.permute.xlu0 %792
  %794 = vrot.lane.b32.xlu0 %v17, 90
  %v795 = vpop.permute.xlu0 %794
  %796 = vrot.lane.b32.xlu0 %v18, 90
  %v797 = vpop.permute.xlu0 %796
  %798 = vrot.lane.b32.xlu0 %v21, 90
  %v799 = vpop.permute.xlu0 %798
  %vm800 = vcmask 736256
  %v801 = vsel %vm800, %v793, %v795
  %v802 = vsel %vm800, %v795, %v797
  %v803 = vsel %vm800, %v797, %v799
  %v808 = vsel %vm44, %v790, 0
  %v811 = vsel %vm44, %v791, 0
  %813 = vmatpush.msra.mxu0 0.0
  %814 = vmatpush.msra.mxu0 0.0
  %815 = vmatpush.msra.mxu0 0.0
  %816 = vmatpush.msra.mxu0 0.0
  %817 = vmatpush.msra.mxu0 0.0
  %818 = vmatpush.msra.mxu0 0.0
  %819 = vmatpush.msra.mxu0 0.0
  %820 = vmatpush.msra.mxu0 0.0
  %821 = vmatpush.msra.mxu0 0.0
  %822 = vmatpush.msra.mxu0 0.0
  %823 = vmatpush.msra.mxu0 0.0
  %824 = vmatpush.msra.mxu0 0.0
  %825 = vmatpush.msra.mxu0 0.0
  %826 = vmatpush.msra.mxu0 0.0
  %827 = vmatpush.msra.mxu0 0.0
  %828 = vmatpush.msra.mxu0 %v801
  %829 = vmatmul.f32.gmra.mxu0 %v808
  %v830 = vpop.f32.mrf.mxu0
  %v831 = vadd.f32 0.0, %v830
  %832 = vmatmul.f32.gmra.mxu0 %v811
  %v833 = vpop.f32.mrf.mxu0
  %v834 = vadd.f32 0.0, %v833
  %835 = vdwg.mxu0
  %836 = vmatpush.msra.mxu0 0.0
  %837 = vmatpush.msra.mxu0 0.0
  %838 = vmatpush.msra.mxu0 0.0
  %839 = vmatpush.msra.mxu0 0.0
  %840 = vmatpush.msra.mxu0 0.0
  %841 = vmatpush.msra.mxu0 0.0
  %842 = vmatpush.msra.mxu0 0.0
  %843 = vmatpush.msra.mxu0 0.0
  %844 = vmatpush.msra.mxu0 0.0
  %845 = vmatpush.msra.mxu0 0.0
  %846 = vmatpush.msra.mxu0 0.0
  %847 = vmatpush.msra.mxu0 0.0
  %848 = vmatpush.msra.mxu0 0.0
  %849 = vmatpush.msra.mxu0 0.0
  %850 = vmatpush.msra.mxu0 0.0
  %851 = vmatpush.msra.mxu0 %v802
  %852 = vmatmul.f32.gmra.mxu0 %v808
  %v853 = vpop.f32.mrf.mxu0
  %v854 = vadd.f32 0.0, %v853
  %855 = vmatmul.f32.gmra.mxu0 %v811
  %v856 = vpop.f32.mrf.mxu0
  %v857 = vadd.f32 0.0, %v856
  %858 = vdwg.mxu0
  %859 = vmatpush.msra.mxu0 0.0
  %860 = vmatpush.msra.mxu0 0.0
  %861 = vmatpush.msra.mxu0 0.0
  %862 = vmatpush.msra.mxu0 0.0
  %863 = vmatpush.msra.mxu0 0.0
  %864 = vmatpush.msra.mxu0 0.0
  %865 = vmatpush.msra.mxu0 0.0
  %866 = vmatpush.msra.mxu0 0.0
  %867 = vmatpush.msra.mxu0 0.0
  %868 = vmatpush.msra.mxu0 0.0
  %869 = vmatpush.msra.mxu0 0.0
  %870 = vmatpush.msra.mxu0 0.0
  %871 = vmatpush.msra.mxu0 0.0
  %872 = vmatpush.msra.mxu0 0.0
  %873 = vmatpush.msra.mxu0 0.0
  %874 = vmatpush.msra.mxu0 %v803
  %875 = vmatmul.f32.gmra.mxu0 %v808
  %v876 = vpop.f32.mrf.mxu0
  %v877 = vadd.f32 0.0, %v876
  %878 = vmatmul.f32.gmra.mxu0 %v811
  %v879 = vpop.f32.mrf.mxu0
  %v880 = vadd.f32 0.0, %v879
  %881 = vdwg.mxu0
  %v882 = vadd.f32 %v783, %v831
  %v883 = vadd.f32 %v784, %v854
  %v884 = vadd.f32 %v785, %v877
  %v885 = vadd.f32 %v786, %v834
  %v886 = vadd.f32 %v787, %v857
  %v887 = vadd.f32 %v788, %v880
  %889 = vset.pattern.permute.xlu0 0
  %890 = vperm.xlu0 %889, %v14
  %v891 = vpop.permute.xlu0 %890
  %894 = vset.pattern.permute.xlu0 0
  %895 = vperm.xlu0 %894, %v15
  %v896 = vpop.permute.xlu0 %895
  %v898 = vadd.f32 %v882, %v891
  %v899 = vadd.f32 %v883, %v891
  %v900 = vadd.f32 %v884, %v891
  %v901 = vadd.f32 %v885, %v896
  %v902 = vadd.f32 %v886, %v896
  %v903 = vadd.f32 %v887, %v896
  %904 = vst [vmem:[%s3] sm:$0xff] %v898
  %905 = vst [vmem:[%s3 + $0x8] sm:$0xff] %v899
  %906 = vst [vmem:[%s3 + $0x10] sm:$0xff] %v900
  %907 = vst [vmem:[%s3 + $0x18] sm:$0xff] %v901
  %908 = vst [vmem:[%s3 + $0x20] sm:$0xff] %v902
  %909 = vst [vmem:[%s3 + $0x28] sm:$0xff] %v903
  %s910 = scalar_lea.vmem %s0, 32
  %v911 = vld [vmem:[%s910] sm:$0xff]
  %v912 = vld [vmem:[%s910 + $0x8] sm:$0xff]
  %v913 = vld [vmem:[%s910 + $0x10] sm:$0xff]
  %v914 = vld [vmem:[%s1] sm:$0xff]
  %v915 = vld [vmem:[%s1 + $0x8] sm:$0xff]
  %v916 = vld [vmem:[%s910 + $0x18] sm:$0xff]
  %v917 = vld [vmem:[%s22] sm:$0xff]
  %v918 = vld [vmem:[%s22 + $0x8] sm:$0xff]
  %923 = vrot.lane.b32.xlu0 %v911, 127
  %v924 = vpop.permute.xlu0 %923
  %925 = vrot.lane.b32.xlu0 %v912, 127
  %v926 = vpop.permute.xlu0 %925
  %927 = vrot.lane.b32.xlu0 %v913, 127
  %v928 = vpop.permute.xlu0 %927
  %929 = vrot.lane.b32.xlu0 %v916, 127
  %v930 = vpop.permute.xlu0 %929
  %v931 = vsel %vm37, %v924, %v926
  %v932 = vsel %vm37, %v926, %v928
  %v933 = vsel %vm37, %v928, %v930
  %v938 = vsel %vm44, %v917, 0
  %v941 = vsel %vm44, %v918, 0
  %943 = vmatpush.msra.mxu0 0.0
  %944 = vmatpush.msra.mxu0 0.0
  %945 = vmatpush.msra.mxu0 0.0
  %946 = vmatpush.msra.mxu0 0.0
  %947 = vmatpush.msra.mxu0 0.0
  %948 = vmatpush.msra.mxu0 0.0
  %949 = vmatpush.msra.mxu0 0.0
  %950 = vmatpush.msra.mxu0 0.0
  %951 = vmatpush.msra.mxu0 0.0
  %952 = vmatpush.msra.mxu0 0.0
  %953 = vmatpush.msra.mxu0 0.0
  %954 = vmatpush.msra.mxu0 0.0
  %955 = vmatpush.msra.mxu0 0.0
  %956 = vmatpush.msra.mxu0 0.0
  %957 = vmatpush.msra.mxu0 0.0
  %958 = vmatpush.msra.mxu0 %v931
  %959 = vmatmul.f32.gmra.mxu0 %v938
  %v960 = vpop.f32.mrf.mxu0
  %v961 = vadd.f32 0.0, %v960
  %962 = vmatmul.f32.gmra.mxu0 %v941
  %v963 = vpop.f32.mrf.mxu0
  %v964 = vadd.f32 0.0, %v963
  %965 = vdwg.mxu0
  %966 = vmatpush.msra.mxu0 0.0
  %967 = vmatpush.msra.mxu0 0.0
  %968 = vmatpush.msra.mxu0 0.0
  %969 = vmatpush.msra.mxu0 0.0
  %970 = vmatpush.msra.mxu0 0.0
  %971 = vmatpush.msra.mxu0 0.0
  %972 = vmatpush.msra.mxu0 0.0
  %973 = vmatpush.msra.mxu0 0.0
  %974 = vmatpush.msra.mxu0 0.0
  %975 = vmatpush.msra.mxu0 0.0
  %976 = vmatpush.msra.mxu0 0.0
  %977 = vmatpush.msra.mxu0 0.0
  %978 = vmatpush.msra.mxu0 0.0
  %979 = vmatpush.msra.mxu0 0.0
  %980 = vmatpush.msra.mxu0 0.0
  %981 = vmatpush.msra.mxu0 %v932
  %982 = vmatmul.f32.gmra.mxu0 %v938
  %v983 = vpop.f32.mrf.mxu0
  %v984 = vadd.f32 0.0, %v983
  %985 = vmatmul.f32.gmra.mxu0 %v941
  %v986 = vpop.f32.mrf.mxu0
  %v987 = vadd.f32 0.0, %v986
  %988 = vdwg.mxu0
  %989 = vmatpush.msra.mxu0 0.0
  %990 = vmatpush.msra.mxu0 0.0
  %991 = vmatpush.msra.mxu0 0.0
  %992 = vmatpush.msra.mxu0 0.0
  %993 = vmatpush.msra.mxu0 0.0
  %994 = vmatpush.msra.mxu0 0.0
  %995 = vmatpush.msra.mxu0 0.0
  %996 = vmatpush.msra.mxu0 0.0
  %997 = vmatpush.msra.mxu0 0.0
  %998 = vmatpush.msra.mxu0 0.0
  %999 = vmatpush.msra.mxu0 0.0
  %1000 = vmatpush.msra.mxu0 0.0
  %1001 = vmatpush.msra.mxu0 0.0
  %1002 = vmatpush.msra.mxu0 0.0
  %1003 = vmatpush.msra.mxu0 0.0
  %1004 = vmatpush.msra.mxu0 %v933
  %1005 = vmatmul.f32.gmra.mxu0 %v938
  %v1006 = vpop.f32.mrf.mxu0
  %v1007 = vadd.f32 0.0, %v1006
  %1008 = vmatmul.f32.gmra.mxu0 %v941
  %v1009 = vpop.f32.mrf.mxu0
  %v1010 = vadd.f32 0.0, %v1009
  %1011 = vdwg.mxu0
  %v1013 = vsel %vm44, %v914, 0
  %v1016 = vsel %vm44, %v915, 0
  %1018 = vmatpush.msra.mxu0 0.0
  %1019 = vmatpush.msra.mxu0 0.0
  %1020 = vmatpush.msra.mxu0 0.0
  %1021 = vmatpush.msra.mxu0 0.0
  %1022 = vmatpush.msra.mxu0 0.0
  %1023 = vmatpush.msra.mxu0 0.0
  %1024 = vmatpush.msra.mxu0 0.0
  %1025 = vmatpush.msra.mxu0 0.0
  %1026 = vmatpush.msra.mxu0 0.0
  %1027 = vmatpush.msra.mxu0 0.0
  %1028 = vmatpush.msra.mxu0 0.0
  %1029 = vmatpush.msra.mxu0 0.0
  %1030 = vmatpush.msra.mxu0 0.0
  %1031 = vmatpush.msra.mxu0 0.0
  %1032 = vmatpush.msra.mxu0 0.0
  %1033 = vmatpush.msra.mxu0 %v911
  %1034 = vmatmul.f32.gmra.mxu0 %v1013
  %v1035 = vpop.f32.mrf.mxu0
  %v1036 = vadd.f32 %v961, %v1035
  %1037 = vmatmul.f32.gmra.mxu0 %v1016
  %v1038 = vpop.f32.mrf.mxu0
  %v1039 = vadd.f32 %v964, %v1038
  %1040 = vdwg.mxu0
  %1041 = vmatpush.msra.mxu0 0.0
  %1042 = vmatpush.msra.mxu0 0.0
  %1043 = vmatpush.msra.mxu0 0.0
  %1044 = vmatpush.msra.mxu0 0.0
  %1045 = vmatpush.msra.mxu0 0.0
  %1046 = vmatpush.msra.mxu0 0.0
  %1047 = vmatpush.msra.mxu0 0.0
  %1048 = vmatpush.msra.mxu0 0.0
  %1049 = vmatpush.msra.mxu0 0.0
  %1050 = vmatpush.msra.mxu0 0.0
  %1051 = vmatpush.msra.mxu0 0.0
  %1052 = vmatpush.msra.mxu0 0.0
  %1053 = vmatpush.msra.mxu0 0.0
  %1054 = vmatpush.msra.mxu0 0.0
  %1055 = vmatpush.msra.mxu0 0.0
  %1056 = vmatpush.msra.mxu0 %v912
  %1057 = vmatmul.f32.gmra.mxu0 %v1013
  %v1058 = vpop.f32.mrf.mxu0
  %v1059 = vadd.f32 %v984, %v1058
  %1060 = vmatmul.f32.gmra.mxu0 %v1016
  %v1061 = vpop.f32.mrf.mxu0
  %v1062 = vadd.f32 %v987, %v1061
  %1063 = vdwg.mxu0
  %1064 = vmatpush.msra.mxu0 0.0
  %1065 = vmatpush.msra.mxu0 0.0
  %1066 = vmatpush.msra.mxu0 0.0
  %1067 = vmatpush.msra.mxu0 0.0
  %1068 = vmatpush.msra.mxu0 0.0
  %1069 = vmatpush.msra.mxu0 0.0
  %1070 = vmatpush.msra.mxu0 0.0
  %1071 = vmatpush.msra.mxu0 0.0
  %1072 = vmatpush.msra.mxu0 0.0
  %1073 = vmatpush.msra.mxu0 0.0
  %1074 = vmatpush.msra.mxu0 0.0
  %1075 = vmatpush.msra.mxu0 0.0
  %1076 = vmatpush.msra.mxu0 0.0
  %1077 = vmatpush.msra.mxu0 0.0
  %1078 = vmatpush.msra.mxu0 0.0
  %1079 = vmatpush.msra.mxu0 %v913
  %1080 = vmatmul.f32.gmra.mxu0 %v1013
  %v1081 = vpop.f32.mrf.mxu0
  %v1082 = vadd.f32 %v1007, %v1081
  %1083 = vmatmul.f32.gmra.mxu0 %v1016
  %v1084 = vpop.f32.mrf.mxu0
  %v1085 = vadd.f32 %v1010, %v1084
  %1086 = vdwg.mxu0
  %v1087 = vld [vmem:[%s195] sm:$0xff]
  %v1088 = vld [vmem:[%s195 + $0x8] sm:$0xff]
  %1089 = vrot.lane.b32.xlu0 %v911, 126
  %v1090 = vpop.permute.xlu0 %1089
  %1091 = vrot.lane.b32.xlu0 %v912, 126
  %v1092 = vpop.permute.xlu0 %1091
  %1093 = vrot.lane.b32.xlu0 %v913, 126
  %v1094 = vpop.permute.xlu0 %1093
  %1095 = vrot.lane.b32.xlu0 %v916, 126
  %v1096 = vpop.permute.xlu0 %1095
  %v1097 = vsel %vm206, %v1090, %v1092
  %v1098 = vsel %vm206, %v1092, %v1094
  %v1099 = vsel %vm206, %v1094, %v1096
  %v1104 = vsel %vm44, %v1087, 0
  %v1107 = vsel %vm44, %v1088, 0
  %1109 = vmatpush.msra.mxu0 0.0
  %1110 = vmatpush.msra.mxu0 0.0
  %1111 = vmatpush.msra.mxu0 0.0
  %1112 = vmatpush.msra.mxu0 0.0
  %1113 = vmatpush.msra.mxu0 0.0
  %1114 = vmatpush.msra.mxu0 0.0
  %1115 = vmatpush.msra.mxu0 0.0
  %1116 = vmatpush.msra.mxu0 0.0
  %1117 = vmatpush.msra.mxu0 0.0
  %1118 = vmatpush.msra.mxu0 0.0
  %1119 = vmatpush.msra.mxu0 0.0
  %1120 = vmatpush.msra.mxu0 0.0
  %1121 = vmatpush.msra.mxu0 0.0
  %1122 = vmatpush.msra.mxu0 0.0
  %1123 = vmatpush.msra.mxu0 0.0
  %1124 = vmatpush.msra.mxu0 %v1097
  %1125 = vmatmul.f32.gmra.mxu0 %v1104
  %v1126 = vpop.f32.mrf.mxu0
  %v1127 = vadd.f32 0.0, %v1126
  %1128 = vmatmul.f32.gmra.mxu0 %v1107
  %v1129 = vpop.f32.mrf.mxu0
  %v1130 = vadd.f32 0.0, %v1129
  %1131 = vdwg.mxu0
  %1132 = vmatpush.msra.mxu0 0.0
  %1133 = vmatpush.msra.mxu0 0.0
  %1134 = vmatpush.msra.mxu0 0.0
  %1135 = vmatpush.msra.mxu0 0.0
  %1136 = vmatpush.msra.mxu0 0.0
  %1137 = vmatpush.msra.mxu0 0.0
  %1138 = vmatpush.msra.mxu0 0.0
  %1139 = vmatpush.msra.mxu0 0.0
  %1140 = vmatpush.msra.mxu0 0.0
  %1141 = vmatpush.msra.mxu0 0.0
  %1142 = vmatpush.msra.mxu0 0.0
  %1143 = vmatpush.msra.mxu0 0.0
  %1144 = vmatpush.msra.mxu0 0.0
  %1145 = vmatpush.msra.mxu0 0.0
  %1146 = vmatpush.msra.mxu0 0.0
  %1147 = vmatpush.msra.mxu0 %v1098
  %1148 = vmatmul.f32.gmra.mxu0 %v1104
  %v1149 = vpop.f32.mrf.mxu0
  %v1150 = vadd.f32 0.0, %v1149
  %1151 = vmatmul.f32.gmra.mxu0 %v1107
  %v1152 = vpop.f32.mrf.mxu0
  %v1153 = vadd.f32 0.0, %v1152
  %1154 = vdwg.mxu0
  %1155 = vmatpush.msra.mxu0 0.0
  %1156 = vmatpush.msra.mxu0 0.0
  %1157 = vmatpush.msra.mxu0 0.0
  %1158 = vmatpush.msra.mxu0 0.0
  %1159 = vmatpush.msra.mxu0 0.0
  %1160 = vmatpush.msra.mxu0 0.0
  %1161 = vmatpush.msra.mxu0 0.0
  %1162 = vmatpush.msra.mxu0 0.0
  %1163 = vmatpush.msra.mxu0 0.0
  %1164 = vmatpush.msra.mxu0 0.0
  %1165 = vmatpush.msra.mxu0 0.0
  %1166 = vmatpush.msra.mxu0 0.0
  %1167 = vmatpush.msra.mxu0 0.0
  %1168 = vmatpush.msra.mxu0 0.0
  %1169 = vmatpush.msra.mxu0 0.0
  %1170 = vmatpush.msra.mxu0 %v1099
  %1171 = vmatmul.f32.gmra.mxu0 %v1104
  %v1172 = vpop.f32.mrf.mxu0
  %v1173 = vadd.f32 0.0, %v1172
  %1174 = vmatmul.f32.gmra.mxu0 %v1107
  %v1175 = vpop.f32.mrf.mxu0
  %v1176 = vadd.f32 0.0, %v1175
  %1177 = vdwg.mxu0
  %v1178 = vadd.f32 %v1036, %v1127
  %v1179 = vadd.f32 %v1059, %v1150
  %v1180 = vadd.f32 %v1082, %v1173
  %v1181 = vadd.f32 %v1039, %v1130
  %v1182 = vadd.f32 %v1062, %v1153
  %v1183 = vadd.f32 %v1085, %v1176
  %v1184 = vld [vmem:[%s294] sm:$0xff]
  %v1185 = vld [vmem:[%s294 + $0x8] sm:$0xff]
  %1186 = vrot.lane.b32.xlu0 %v911, 110
  %v1187 = vpop.permute.xlu0 %1186
  %1188 = vrot.lane.b32.xlu0 %v912, 110
  %v1189 = vpop.permute.xlu0 %1188
  %1190 = vrot.lane.b32.xlu0 %v913, 110
  %v1191 = vpop.permute.xlu0 %1190
  %1192 = vrot.lane.b32.xlu0 %v916, 110
  %v1193 = vpop.permute.xlu0 %1192
  %v1194 = vsel %vm305, %v1187, %v1189
  %v1195 = vsel %vm305, %v1189, %v1191
  %v1196 = vsel %vm305, %v1191, %v1193
  %v1201 = vsel %vm44, %v1184, 0
  %v1204 = vsel %vm44, %v1185, 0
  %1206 = vmatpush.msra.mxu0 0.0
  %1207 = vmatpush.msra.mxu0 0.0
  %1208 = vmatpush.msra.mxu0 0.0
  %1209 = vmatpush.msra.mxu0 0.0
  %1210 = vmatpush.msra.mxu0 0.0
  %1211 = vmatpush.msra.mxu0 0.0
  %1212 = vmatpush.msra.mxu0 0.0
  %1213 = vmatpush.msra.mxu0 0.0
  %1214 = vmatpush.msra.mxu0 0.0
  %1215 = vmatpush.msra.mxu0 0.0
  %1216 = vmatpush.msra.mxu0 0.0
  %1217 = vmatpush.msra.mxu0 0.0
  %1218 = vmatpush.msra.mxu0 0.0
  %1219 = vmatpush.msra.mxu0 0.0
  %1220 = vmatpush.msra.mxu0 0.0
  %1221 = vmatpush.msra.mxu0 %v1194
  %1222 = vmatmul.f32.gmra.mxu0 %v1201
  %v1223 = vpop.f32.mrf.mxu0
  %v1224 = vadd.f32 0.0, %v1223
  %1225 = vmatmul.f32.gmra.mxu0 %v1204
  %v1226 = vpop.f32.mrf.mxu0
  %v1227 = vadd.f32 0.0, %v1226
  %1228 = vdwg.mxu0
  %1229 = vmatpush.msra.mxu0 0.0
  %1230 = vmatpush.msra.mxu0 0.0
  %1231 = vmatpush.msra.mxu0 0.0
  %1232 = vmatpush.msra.mxu0 0.0
  %1233 = vmatpush.msra.mxu0 0.0
  %1234 = vmatpush.msra.mxu0 0.0
  %1235 = vmatpush.msra.mxu0 0.0
  %1236 = vmatpush.msra.mxu0 0.0
  %1237 = vmatpush.msra.mxu0 0.0
  %1238 = vmatpush.msra.mxu0 0.0
  %1239 = vmatpush.msra.mxu0 0.0
  %1240 = vmatpush.msra.mxu0 0.0
  %1241 = vmatpush.msra.mxu0 0.0
  %1242 = vmatpush.msra.mxu0 0.0
  %1243 = vmatpush.msra.mxu0 0.0
  %1244 = vmatpush.msra.mxu0 %v1195
  %1245 = vmatmul.f32.gmra.mxu0 %v1201
  %v1246 = vpop.f32.mrf.mxu0
  %v1247 = vadd.f32 0.0, %v1246
  %1248 = vmatmul.f32.gmra.mxu0 %v1204
  %v1249 = vpop.f32.mrf.mxu0
  %v1250 = vadd.f32 0.0, %v1249
  %1251 = vdwg.mxu0
  %1252 = vmatpush.msra.mxu0 0.0
  %1253 = vmatpush.msra.mxu0 0.0
  %1254 = vmatpush.msra.mxu0 0.0
  %1255 = vmatpush.msra.mxu0 0.0
  %1256 = vmatpush.msra.mxu0 0.0
  %1257 = vmatpush.msra.mxu0 0.0
  %1258 = vmatpush.msra.mxu0 0.0
  %1259 = vmatpush.msra.mxu0 0.0
  %1260 = vmatpush.msra.mxu0 0.0
  %1261 = vmatpush.msra.mxu0 0.0
  %1262 = vmatpush.msra.mxu0 0.0
  %1263 = vmatpush.msra.mxu0 0.0
  %1264 = vmatpush.msra.mxu0 0.0
  %1265 = vmatpush.msra.mxu0 0.0
  %1266 = vmatpush.msra.mxu0 0.0
  %1267 = vmatpush.msra.mxu0 %v1196
  %1268 = vmatmul.f32.gmra.mxu0 %v1201
  %v1269 = vpop.f32.mrf.mxu0
  %v1270 = vadd.f32 0.0, %v1269
  %1271 = vmatmul.f32.gmra.mxu0 %v1204
  %v1272 = vpop.f32.mrf.mxu0
  %v1273 = vadd.f32 0.0, %v1272
  %1274 = vdwg.mxu0
  %v1275 = vadd.f32 %v1178, %v1224
  %v1276 = vadd.f32 %v1179, %v1247
  %v1277 = vadd.f32 %v1180, %v1270
  %v1278 = vadd.f32 %v1181, %v1227
  %v1279 = vadd.f32 %v1182, %v1250
  %v1280 = vadd.f32 %v1183, %v1273
  %v1281 = vld [vmem:[%s393] sm:$0xff]
  %v1282 = vld [vmem:[%s393 + $0x8] sm:$0xff]
  %1283 = vrot.lane.b32.xlu0 %v911, 109
  %v1284 = vpop.permute.xlu0 %1283
  %1285 = vrot.lane.b32.xlu0 %v912, 109
  %v1286 = vpop.permute.xlu0 %1285
  %1287 = vrot.lane.b32.xlu0 %v913, 109
  %v1288 = vpop.permute.xlu0 %1287
  %1289 = vrot.lane.b32.xlu0 %v916, 109
  %v1290 = vpop.permute.xlu0 %1289
  %v1291 = vsel %vm404, %v1284, %v1286
  %v1292 = vsel %vm404, %v1286, %v1288
  %v1293 = vsel %vm404, %v1288, %v1290
  %v1298 = vsel %vm44, %v1281, 0
  %v1301 = vsel %vm44, %v1282, 0
  %1303 = vmatpush.msra.mxu0 0.0
  %1304 = vmatpush.msra.mxu0 0.0
  %1305 = vmatpush.msra.mxu0 0.0
  %1306 = vmatpush.msra.mxu0 0.0
  %1307 = vmatpush.msra.mxu0 0.0
  %1308 = vmatpush.msra.mxu0 0.0
  %1309 = vmatpush.msra.mxu0 0.0
  %1310 = vmatpush.msra.mxu0 0.0
  %1311 = vmatpush.msra.mxu0 0.0
  %1312 = vmatpush.msra.mxu0 0.0
  %1313 = vmatpush.msra.mxu0 0.0
  %1314 = vmatpush.msra.mxu0 0.0
  %1315 = vmatpush.msra.mxu0 0.0
  %1316 = vmatpush.msra.mxu0 0.0
  %1317 = vmatpush.msra.mxu0 0.0
  %1318 = vmatpush.msra.mxu0 %v1291
  %1319 = vmatmul.f32.gmra.mxu0 %v1298
  %v1320 = vpop.f32.mrf.mxu0
  %v1321 = vadd.f32 0.0, %v1320
  %1322 = vmatmul.f32.gmra.mxu0 %v1301
  %v1323 = vpop.f32.mrf.mxu0
  %v1324 = vadd.f32 0.0, %v1323
  %1325 = vdwg.mxu0
  %1326 = vmatpush.msra.mxu0 0.0
  %1327 = vmatpush.msra.mxu0 0.0
  %1328 = vmatpush.msra.mxu0 0.0
  %1329 = vmatpush.msra.mxu0 0.0
  %1330 = vmatpush.msra.mxu0 0.0
  %1331 = vmatpush.msra.mxu0 0.0
  %1332 = vmatpush.msra.mxu0 0.0
  %1333 = vmatpush.msra.mxu0 0.0
  %1334 = vmatpush.msra.mxu0 0.0
  %1335 = vmatpush.msra.mxu0 0.0
  %1336 = vmatpush.msra.mxu0 0.0
  %1337 = vmatpush.msra.mxu0 0.0
  %1338 = vmatpush.msra.mxu0 0.0
  %1339 = vmatpush.msra.mxu0 0.0
  %1340 = vmatpush.msra.mxu0 0.0
  %1341 = vmatpush.msra.mxu0 %v1292
  %1342 = vmatmul.f32.gmra.mxu0 %v1298
  %v1343 = vpop.f32.mrf.mxu0
  %v1344 = vadd.f32 0.0, %v1343
  %1345 = vmatmul.f32.gmra.mxu0 %v1301
  %v1346 = vpop.f32.mrf.mxu0
  %v1347 = vadd.f32 0.0, %v1346
  %1348 = vdwg.mxu0
  %1349 = vmatpush.msra.mxu0 0.0
  %1350 = vmatpush.msra.mxu0 0.0
  %1351 = vmatpush.msra.mxu0 0.0
  %1352 = vmatpush.msra.mxu0 0.0
  %1353 = vmatpush.msra.mxu0 0.0
  %1354 = vmatpush.msra.mxu0 0.0
  %1355 = vmatpush.msra.mxu0 0.0
  %1356 = vmatpush.msra.mxu0 0.0
  %1357 = vmatpush.msra.mxu0 0.0
  %1358 = vmatpush.msra.mxu0 0.0
  %1359 = vmatpush.msra.mxu0 0.0
  %1360 = vmatpush.msra.mxu0 0.0
  %1361 = vmatpush.msra.mxu0 0.0
  %1362 = vmatpush.msra.mxu0 0.0
  %1363 = vmatpush.msra.mxu0 0.0
  %1364 = vmatpush.msra.mxu0 %v1293
  %1365 = vmatmul.f32.gmra.mxu0 %v1298
  %v1366 = vpop.f32.mrf.mxu0
  %v1367 = vadd.f32 0.0, %v1366
  %1368 = vmatmul.f32.gmra.mxu0 %v1301
  %v1369 = vpop.f32.mrf.mxu0
  %v1370 = vadd.f32 0.0, %v1369
  %1371 = vdwg.mxu0
  %v1372 = vadd.f32 %v1275, %v1321
  %v1373 = vadd.f32 %v1276, %v1344
  %v1374 = vadd.f32 %v1277, %v1367
  %v1375 = vadd.f32 %v1278, %v1324
  %v1376 = vadd.f32 %v1279, %v1347
  %v1377 = vadd.f32 %v1280, %v1370
  %v1378 = vld [vmem:[%s492] sm:$0xff]
  %v1379 = vld [vmem:[%s492 + $0x8] sm:$0xff]
  %1380 = vrot.lane.b32.xlu0 %v911, 108
  %v1381 = vpop.permute.xlu0 %1380
  %1382 = vrot.lane.b32.xlu0 %v912, 108
  %v1383 = vpop.permute.xlu0 %1382
  %1384 = vrot.lane.b32.xlu0 %v913, 108
  %v1385 = vpop.permute.xlu0 %1384
  %1386 = vrot.lane.b32.xlu0 %v916, 108
  %v1387 = vpop.permute.xlu0 %1386
  %v1388 = vsel %vm503, %v1381, %v1383
  %v1389 = vsel %vm503, %v1383, %v1385
  %v1390 = vsel %vm503, %v1385, %v1387
  %v1395 = vsel %vm44, %v1378, 0
  %v1398 = vsel %vm44, %v1379, 0
  %1400 = vmatpush.msra.mxu0 0.0
  %1401 = vmatpush.msra.mxu0 0.0
  %1402 = vmatpush.msra.mxu0 0.0
  %1403 = vmatpush.msra.mxu0 0.0
  %1404 = vmatpush.msra.mxu0 0.0
  %1405 = vmatpush.msra.mxu0 0.0
  %1406 = vmatpush.msra.mxu0 0.0
  %1407 = vmatpush.msra.mxu0 0.0
  %1408 = vmatpush.msra.mxu0 0.0
  %1409 = vmatpush.msra.mxu0 0.0
  %1410 = vmatpush.msra.mxu0 0.0
  %1411 = vmatpush.msra.mxu0 0.0
  %1412 = vmatpush.msra.mxu0 0.0
  %1413 = vmatpush.msra.mxu0 0.0
  %1414 = vmatpush.msra.mxu0 0.0
  %1415 = vmatpush.msra.mxu0 %v1388
  %1416 = vmatmul.f32.gmra.mxu0 %v1395
  %v1417 = vpop.f32.mrf.mxu0
  %v1418 = vadd.f32 0.0, %v1417
  %1419 = vmatmul.f32.gmra.mxu0 %v1398
  %v1420 = vpop.f32.mrf.mxu0
  %v1421 = vadd.f32 0.0, %v1420
  %1422 = vdwg.mxu0
  %1423 = vmatpush.msra.mxu0 0.0
  %1424 = vmatpush.msra.mxu0 0.0
  %1425 = vmatpush.msra.mxu0 0.0
  %1426 = vmatpush.msra.mxu0 0.0
  %1427 = vmatpush.msra.mxu0 0.0
  %1428 = vmatpush.msra.mxu0 0.0
  %1429 = vmatpush.msra.mxu0 0.0
  %1430 = vmatpush.msra.mxu0 0.0
  %1431 = vmatpush.msra.mxu0 0.0
  %1432 = vmatpush.msra.mxu0 0.0
  %1433 = vmatpush.msra.mxu0 0.0
  %1434 = vmatpush.msra.mxu0 0.0
  %1435 = vmatpush.msra.mxu0 0.0
  %1436 = vmatpush.msra.mxu0 0.0
  %1437 = vmatpush.msra.mxu0 0.0
  %1438 = vmatpush.msra.mxu0 %v1389
  %1439 = vmatmul.f32.gmra.mxu0 %v1395
  %v1440 = vpop.f32.mrf.mxu0
  %v1441 = vadd.f32 0.0, %v1440
  %1442 = vmatmul.f32.gmra.mxu0 %v1398
  %v1443 = vpop.f32.mrf.mxu0
  %v1444 = vadd.f32 0.0, %v1443
  %1445 = vdwg.mxu0
  %1446 = vmatpush.msra.mxu0 0.0
  %1447 = vmatpush.msra.mxu0 0.0
  %1448 = vmatpush.msra.mxu0 0.0
  %1449 = vmatpush.msra.mxu0 0.0
  %1450 = vmatpush.msra.mxu0 0.0
  %1451 = vmatpush.msra.mxu0 0.0
  %1452 = vmatpush.msra.mxu0 0.0
  %1453 = vmatpush.msra.mxu0 0.0
  %1454 = vmatpush.msra.mxu0 0.0
  %1455 = vmatpush.msra.mxu0 0.0
  %1456 = vmatpush.msra.mxu0 0.0
  %1457 = vmatpush.msra.mxu0 0.0
  %1458 = vmatpush.msra.mxu0 0.0
  %1459 = vmatpush.msra.mxu0 0.0
  %1460 = vmatpush.msra.mxu0 0.0
  %1461 = vmatpush.msra.mxu0 %v1390
  %1462 = vmatmul.f32.gmra.mxu0 %v1395
  %v1463 = vpop.f32.mrf.mxu0
  %v1464 = vadd.f32 0.0, %v1463
  %1465 = vmatmul.f32.gmra.mxu0 %v1398
  %v1466 = vpop.f32.mrf.mxu0
  %v1467 = vadd.f32 0.0, %v1466
  %1468 = vdwg.mxu0
  %v1469 = vadd.f32 %v1372, %v1418
  %v1470 = vadd.f32 %v1373, %v1441
  %v1471 = vadd.f32 %v1374, %v1464
  %v1472 = vadd.f32 %v1375, %v1421
  %v1473 = vadd.f32 %v1376, %v1444
  %v1474 = vadd.f32 %v1377, %v1467
  %v1475 = vld [vmem:[%s591] sm:$0xff]
  %v1476 = vld [vmem:[%s591 + $0x8] sm:$0xff]
  %1477 = vrot.lane.b32.xlu0 %v911, 92
  %v1478 = vpop.permute.xlu0 %1477
  %1479 = vrot.lane.b32.xlu0 %v912, 92
  %v1480 = vpop.permute.xlu0 %1479
  %1481 = vrot.lane.b32.xlu0 %v913, 92
  %v1482 = vpop.permute.xlu0 %1481
  %1483 = vrot.lane.b32.xlu0 %v916, 92
  %v1484 = vpop.permute.xlu0 %1483
  %v1485 = vsel %vm602, %v1478, %v1480
  %v1486 = vsel %vm602, %v1480, %v1482
  %v1487 = vsel %vm602, %v1482, %v1484
  %v1492 = vsel %vm44, %v1475, 0
  %v1495 = vsel %vm44, %v1476, 0
  %1497 = vmatpush.msra.mxu0 0.0
  %1498 = vmatpush.msra.mxu0 0.0
  %1499 = vmatpush.msra.mxu0 0.0
  %1500 = vmatpush.msra.mxu0 0.0
  %1501 = vmatpush.msra.mxu0 0.0
  %1502 = vmatpush.msra.mxu0 0.0
  %1503 = vmatpush.msra.mxu0 0.0
  %1504 = vmatpush.msra.mxu0 0.0
  %1505 = vmatpush.msra.mxu0 0.0
  %1506 = vmatpush.msra.mxu0 0.0
  %1507 = vmatpush.msra.mxu0 0.0
  %1508 = vmatpush.msra.mxu0 0.0
  %1509 = vmatpush.msra.mxu0 0.0
  %1510 = vmatpush.msra.mxu0 0.0
  %1511 = vmatpush.msra.mxu0 0.0
  %1512 = vmatpush.msra.mxu0 %v1485
  %1513 = vmatmul.f32.gmra.mxu0 %v1492
  %v1514 = vpop.f32.mrf.mxu0
  %v1515 = vadd.f32 0.0, %v1514
  %1516 = vmatmul.f32.gmra.mxu0 %v1495
  %v1517 = vpop.f32.mrf.mxu0
  %v1518 = vadd.f32 0.0, %v1517
  %1519 = vdwg.mxu0
  %1520 = vmatpush.msra.mxu0 0.0
  %1521 = vmatpush.msra.mxu0 0.0
  %1522 = vmatpush.msra.mxu0 0.0
  %1523 = vmatpush.msra.mxu0 0.0
  %1524 = vmatpush.msra.mxu0 0.0
  %1525 = vmatpush.msra.mxu0 0.0
  %1526 = vmatpush.msra.mxu0 0.0
  %1527 = vmatpush.msra.mxu0 0.0
  %1528 = vmatpush.msra.mxu0 0.0
  %1529 = vmatpush.msra.mxu0 0.0
  %1530 = vmatpush.msra.mxu0 0.0
  %1531 = vmatpush.msra.mxu0 0.0
  %1532 = vmatpush.msra.mxu0 0.0
  %1533 = vmatpush.msra.mxu0 0.0
  %1534 = vmatpush.msra.mxu0 0.0
  %1535 = vmatpush.msra.mxu0 %v1486
  %1536 = vmatmul.f32.gmra.mxu0 %v1492
  %v1537 = vpop.f32.mrf.mxu0
  %v1538 = vadd.f32 0.0, %v1537
  %1539 = vmatmul.f32.gmra.mxu0 %v1495
  %v1540 = vpop.f32.mrf.mxu0
  %v1541 = vadd.f32 0.0, %v1540
  %1542 = vdwg.mxu0
  %1543 = vmatpush.msra.mxu0 0.0
  %1544 = vmatpush.msra.mxu0 0.0
  %1545 = vmatpush.msra.mxu0 0.0
  %1546 = vmatpush.msra.mxu0 0.0
  %1547 = vmatpush.msra.mxu0 0.0
  %1548 = vmatpush.msra.mxu0 0.0
  %1549 = vmatpush.msra.mxu0 0.0
  %1550 = vmatpush.msra.mxu0 0.0
  %1551 = vmatpush.msra.mxu0 0.0
  %1552 = vmatpush.msra.mxu0 0.0
  %1553 = vmatpush.msra.mxu0 0.0
  %1554 = vmatpush.msra.mxu0 0.0
  %1555 = vmatpush.msra.mxu0 0.0
  %1556 = vmatpush.msra.mxu0 0.0
  %1557 = vmatpush.msra.mxu0 0.0
  %1558 = vmatpush.msra.mxu0 %v1487
  %1559 = vmatmul.f32.gmra.mxu0 %v1492
  %v1560 = vpop.f32.mrf.mxu0
  %v1561 = vadd.f32 0.0, %v1560
  %1562 = vmatmul.f32.gmra.mxu0 %v1495
  %v1563 = vpop.f32.mrf.mxu0
  %v1564 = vadd.f32 0.0, %v1563
  %1565 = vdwg.mxu0
  %v1566 = vadd.f32 %v1469, %v1515
  %v1567 = vadd.f32 %v1470, %v1538
  %v1568 = vadd.f32 %v1471, %v1561
  %v1569 = vadd.f32 %v1472, %v1518
  %v1570 = vadd.f32 %v1473, %v1541
  %v1571 = vadd.f32 %v1474, %v1564
  %v1572 = vld [vmem:[%s690] sm:$0xff]
  %v1573 = vld [vmem:[%s690 + $0x8] sm:$0xff]
  %1574 = vrot.lane.b32.xlu0 %v911, 91
  %v1575 = vpop.permute.xlu0 %1574
  %1576 = vrot.lane.b32.xlu0 %v912, 91
  %v1577 = vpop.permute.xlu0 %1576
  %1578 = vrot.lane.b32.xlu0 %v913, 91
  %v1579 = vpop.permute.xlu0 %1578
  %1580 = vrot.lane.b32.xlu0 %v916, 91
  %v1581 = vpop.permute.xlu0 %1580
  %v1582 = vsel %vm701, %v1575, %v1577
  %v1583 = vsel %vm701, %v1577, %v1579
  %v1584 = vsel %vm701, %v1579, %v1581
  %v1589 = vsel %vm44, %v1572, 0
  %v1592 = vsel %vm44, %v1573, 0
  %1594 = vmatpush.msra.mxu0 0.0
  %1595 = vmatpush.msra.mxu0 0.0
  %1596 = vmatpush.msra.mxu0 0.0
  %1597 = vmatpush.msra.mxu0 0.0
  %1598 = vmatpush.msra.mxu0 0.0
  %1599 = vmatpush.msra.mxu0 0.0
  %1600 = vmatpush.msra.mxu0 0.0
  %1601 = vmatpush.msra.mxu0 0.0
  %1602 = vmatpush.msra.mxu0 0.0
  %1603 = vmatpush.msra.mxu0 0.0
  %1604 = vmatpush.msra.mxu0 0.0
  %1605 = vmatpush.msra.mxu0 0.0
  %1606 = vmatpush.msra.mxu0 0.0
  %1607 = vmatpush.msra.mxu0 0.0
  %1608 = vmatpush.msra.mxu0 0.0
  %1609 = vmatpush.msra.mxu0 %v1582
  %1610 = vmatmul.f32.gmra.mxu0 %v1589
  %v1611 = vpop.f32.mrf.mxu0
  %v1612 = vadd.f32 0.0, %v1611
  %1613 = vmatmul.f32.gmra.mxu0 %v1592
  %v1614 = vpop.f32.mrf.mxu0
  %v1615 = vadd.f32 0.0, %v1614
  %1616 = vdwg.mxu0
  %1617 = vmatpush.msra.mxu0 0.0
  %1618 = vmatpush.msra.mxu0 0.0
  %1619 = vmatpush.msra.mxu0 0.0
  %1620 = vmatpush.msra.mxu0 0.0
  %1621 = vmatpush.msra.mxu0 0.0
  %1622 = vmatpush.msra.mxu0 0.0
  %1623 = vmatpush.msra.mxu0 0.0
  %1624 = vmatpush.msra.mxu0 0.0
  %1625 = vmatpush.msra.mxu0 0.0
  %1626 = vmatpush.msra.mxu0 0.0
  %1627 = vmatpush.msra.mxu0 0.0
  %1628 = vmatpush.msra.mxu0 0.0
  %1629 = vmatpush.msra.mxu0 0.0
  %1630 = vmatpush.msra.mxu0 0.0
  %1631 = vmatpush.msra.mxu0 0.0
  %1632 = vmatpush.msra.mxu0 %v1583
  %1633 = vmatmul.f32.gmra.mxu0 %v1589
  %v1634 = vpop.f32.mrf.mxu0
  %v1635 = vadd.f32 0.0, %v1634
  %1636 = vmatmul.f32.gmra.mxu0 %v1592
  %v1637 = vpop.f32.mrf.mxu0
  %v1638 = vadd.f32 0.0, %v1637
  %1639 = vdwg.mxu0
  %1640 = vmatpush.msra.mxu0 0.0
  %1641 = vmatpush.msra.mxu0 0.0
  %1642 = vmatpush.msra.mxu0 0.0
  %1643 = vmatpush.msra.mxu0 0.0
  %1644 = vmatpush.msra.mxu0 0.0
  %1645 = vmatpush.msra.mxu0 0.0
  %1646 = vmatpush.msra.mxu0 0.0
  %1647 = vmatpush.msra.mxu0 0.0
  %1648 = vmatpush.msra.mxu0 0.0
  %1649 = vmatpush.msra.mxu0 0.0
  %1650 = vmatpush.msra.mxu0 0.0
  %1651 = vmatpush.msra.mxu0 0.0
  %1652 = vmatpush.msra.mxu0 0.0
  %1653 = vmatpush.msra.mxu0 0.0
  %1654 = vmatpush.msra.mxu0 0.0
  %1655 = vmatpush.msra.mxu0 %v1584
  %1656 = vmatmul.f32.gmra.mxu0 %v1589
  %v1657 = vpop.f32.mrf.mxu0
  %v1658 = vadd.f32 0.0, %v1657
  %1659 = vmatmul.f32.gmra.mxu0 %v1592
  %v1660 = vpop.f32.mrf.mxu0
  %v1661 = vadd.f32 0.0, %v1660
  %1662 = vdwg.mxu0
  %v1663 = vadd.f32 %v1566, %v1612
  %v1664 = vadd.f32 %v1567, %v1635
  %v1665 = vadd.f32 %v1568, %v1658
  %v1666 = vadd.f32 %v1569, %v1615
  %v1667 = vadd.f32 %v1570, %v1638
  %v1668 = vadd.f32 %v1571, %v1661
  %v1669 = vld [vmem:[%s789] sm:$0xff]
  %v1670 = vld [vmem:[%s789 + $0x8] sm:$0xff]
  %1671 = vrot.lane.b32.xlu0 %v911, 90
  %v1672 = vpop.permute.xlu0 %1671
  %1673 = vrot.lane.b32.xlu0 %v912, 90
  %v1674 = vpop.permute.xlu0 %1673
  %1675 = vrot.lane.b32.xlu0 %v913, 90
  %v1676 = vpop.permute.xlu0 %1675
  %1677 = vrot.lane.b32.xlu0 %v916, 90
  %v1678 = vpop.permute.xlu0 %1677
  %v1679 = vsel %vm800, %v1672, %v1674
  %v1680 = vsel %vm800, %v1674, %v1676
  %v1681 = vsel %vm800, %v1676, %v1678
  %v1686 = vsel %vm44, %v1669, 0
  %v1689 = vsel %vm44, %v1670, 0
  %1691 = vmatpush.msra.mxu0 0.0
  %1692 = vmatpush.msra.mxu0 0.0
  %1693 = vmatpush.msra.mxu0 0.0
  %1694 = vmatpush.msra.mxu0 0.0
  %1695 = vmatpush.msra.mxu0 0.0
  %1696 = vmatpush.msra.mxu0 0.0
  %1697 = vmatpush.msra.mxu0 0.0
  %1698 = vmatpush.msra.mxu0 0.0
  %1699 = vmatpush.msra.mxu0 0.0
  %1700 = vmatpush.msra.mxu0 0.0
  %1701 = vmatpush.msra.mxu0 0.0
  %1702 = vmatpush.msra.mxu0 0.0
  %1703 = vmatpush.msra.mxu0 0.0
  %1704 = vmatpush.msra.mxu0 0.0
  %1705 = vmatpush.msra.mxu0 0.0
  %1706 = vmatpush.msra.mxu0 %v1679
  %1707 = vmatmul.f32.gmra.mxu0 %v1686
  %v1708 = vpop.f32.mrf.mxu0
  %v1709 = vadd.f32 0.0, %v1708
  %1710 = vmatmul.f32.gmra.mxu0 %v1689
  %v1711 = vpop.f32.mrf.mxu0
  %v1712 = vadd.f32 0.0, %v1711
  %1713 = vdwg.mxu0
  %1714 = vmatpush.msra.mxu0 0.0
  %1715 = vmatpush.msra.mxu0 0.0
  %1716 = vmatpush.msra.mxu0 0.0
  %1717 = vmatpush.msra.mxu0 0.0
  %1718 = vmatpush.msra.mxu0 0.0
  %1719 = vmatpush.msra.mxu0 0.0
  %1720 = vmatpush.msra.mxu0 0.0
  %1721 = vmatpush.msra.mxu0 0.0
  %1722 = vmatpush.msra.mxu0 0.0
  %1723 = vmatpush.msra.mxu0 0.0
  %1724 = vmatpush.msra.mxu0 0.0
  %1725 = vmatpush.msra.mxu0 0.0
  %1726 = vmatpush.msra.mxu0 0.0
  %1727 = vmatpush.msra.mxu0 0.0
  %1728 = vmatpush.msra.mxu0 0.0
  %1729 = vmatpush.msra.mxu0 %v1680
  %1730 = vmatmul.f32.gmra.mxu0 %v1686
  %v1731 = vpop.f32.mrf.mxu0
  %v1732 = vadd.f32 0.0, %v1731
  %1733 = vmatmul.f32.gmra.mxu0 %v1689
  %v1734 = vpop.f32.mrf.mxu0
  %v1735 = vadd.f32 0.0, %v1734
  %1736 = vdwg.mxu0
  %1737 = vmatpush.msra.mxu0 0.0
  %1738 = vmatpush.msra.mxu0 0.0
  %1739 = vmatpush.msra.mxu0 0.0
  %1740 = vmatpush.msra.mxu0 0.0
  %1741 = vmatpush.msra.mxu0 0.0
  %1742 = vmatpush.msra.mxu0 0.0
  %1743 = vmatpush.msra.mxu0 0.0
  %1744 = vmatpush.msra.mxu0 0.0
  %1745 = vmatpush.msra.mxu0 0.0
  %1746 = vmatpush.msra.mxu0 0.0
  %1747 = vmatpush.msra.mxu0 0.0
  %1748 = vmatpush.msra.mxu0 0.0
  %1749 = vmatpush.msra.mxu0 0.0
  %1750 = vmatpush.msra.mxu0 0.0
  %1751 = vmatpush.msra.mxu0 0.0
  %1752 = vmatpush.msra.mxu0 %v1681
  %1753 = vmatmul.f32.gmra.mxu0 %v1686
  %v1754 = vpop.f32.mrf.mxu0
  %v1755 = vadd.f32 0.0, %v1754
  %1756 = vmatmul.f32.gmra.mxu0 %v1689
  %v1757 = vpop.f32.mrf.mxu0
  %v1758 = vadd.f32 0.0, %v1757
  %1759 = vdwg.mxu0
  %v1760 = vadd.f32 %v1663, %v1709
  %v1761 = vadd.f32 %v1664, %v1732
  %v1762 = vadd.f32 %v1665, %v1755
  %v1763 = vadd.f32 %v1666, %v1712
  %v1764 = vadd.f32 %v1667, %v1735
  %v1765 = vadd.f32 %v1668, %v1758
  %v1766 = vadd.f32 %v1760, %v891
  %v1767 = vadd.f32 %v1761, %v891
  %v1768 = vadd.f32 %v1762, %v891
  %v1769 = vadd.f32 %v1763, %v896
  %v1770 = vadd.f32 %v1764, %v896
  %v1771 = vadd.f32 %v1765, %v896
  %s1772 = scalar_lea.vmem %s3, 48
  %1773 = vst [vmem:[%s1772] sm:$0xff] %v1766
  %1774 = vst [vmem:[%s1772 + $0x8] sm:$0xff] %v1767
  %1775 = vst [vmem:[%s1772 + $0x10] sm:$0xff] %v1768
  %1776 = vst [vmem:[%s1772 + $0x18] sm:$0xff] %v1769
  %1777 = vst [vmem:[%s1772 + $0x20] sm:$0xff] %v1770
  %1778 = vst [vmem:[%s1772 + $0x28] sm:$0xff] %v1771
  // Predicated region
  $region14: #{basic_block_forward.1} parent=0 // pred_check
    _
  $region15: #{basic_block_forward.1} parent=0 // pred_check_branch
    %1780 = sbr.rel (0) target = $region17
  $region16: #{basic_block_forward.1} parent=0 // pred_region
    _
  $region17: #{basic_block_forward.1} parent=0 // pred_fallthru
    _
  // Predicated region
  $region18: #{basic_block_forward.1} parent=0 // pred_check
    _
  $region19: #{basic_block_forward.1} parent=0 // pred_check_branch
    %1782 = sbr.rel (0) target = $region21
  $region20: #{basic_block_forward.1} parent=0 // pred_region
    _
  $region21: #{basic_block_forward.1} parent=0 // pred_fallthru
    _

</llo_original>
